<compile_context>
chip_gen: v5e
topology: v5e:2x2
jax: 0.10.0
libtpu: 0.0.40
codegen_flags: <defaults>
</compile_context>

<pallas_src>
import jax
import jax.numpy as jnp
from jax.experimental import pallas as pl
from jax.experimental.pallas import tpu as pltpu


def _pooled_feature_kernel(rgb_ref, dep_ref, wv_ref, po_rgb_ref, po_dep_ref):
    # rgb_ref / dep_ref : (1, Cb_blk, T*HW)  backbone features (any float dtype)
    # wv_ref            : (1, T*HW)          f32 window weights (norm folded in)
    # po_*_ref          : (1, Cb_blk, 1)     f32 pooled features
    wv = wv_ref[...]                                      # [1, THW] f32
    x_rgb = rgb_ref[0].astype(jnp.float32)                # [Cb_blk, THW] f32 accum
    x_dep = dep_ref[0].astype(jnp.float32)
    s_rgb = jnp.sum(x_rgb * wv, axis=1, keepdims=True)    # [Cb_blk, 1]
    s_dep = jnp.sum(x_dep * wv, axis=1, keepdims=True)
    po_rgb_ref[...] = s_rgb[None]
    po_dep_ref[...] = s_dep[None]


def _pick_cb_block(cb):
    # ~512-channel blocks keep per-step DMA large (amortizes ~0.35us/step grid
    # overhead) while leaving a >=2-wide parallel axis for the second core.
    for cand in (512, 256, 128, 64, 32, 16, 8):
        if cb % cand == 0:
            return cand
    return cb


def mf_fusion_head(rgb_feat, depth_feat, w3d, bias):
    """rgb_feat / depth_feat: [N, Cb, T, H, W] (NCDHW, any float dtype);
    w3d: [C_out, 2*Cb, 1, 1, 1]; bias: [C_out].  Eval mode (dropout = identity)."""
    N, Cb, T, H, W = rgb_feat.shape
    assert depth_feat.shape == rgb_feat.shape
    assert T >= 2, "AvgPool3d kernel depth 2 requires T >= 2"
    HW = H * W
    THW = T * HW
    C_out = w3d.shape[0]

    # Contiguous (free) reshape — no HBM transpose. Keep the native dtype.
    rgb_k = rgb_feat.reshape(N, Cb, THW)
    dep_k = depth_feat.reshape(N, Cb, THW)

    # AvgPool3d([2,7,7], stride=1) + temporal mean == per-frame window weights
    # (1 at the ends, 2 interior) normalized by (T-1)*2*HW, applied per element.
    t_idx = jnp.arange(T)
    win = jnp.where((t_idx == 0) | (t_idx == T - 1), 1.0, 2.0).astype(jnp.float32)
    norm = 1.0 / ((T - 1) * 2.0 * HW)
    wvec = (jnp.repeat(win, HW) * norm).reshape(1, THW).astype(jnp.float32)

    cb_blk = _pick_cb_block(Cb)
    n_c = Cb // cb_blk

    pooled_rgb, pooled_dep = pl.pallas_call(
        _pooled_feature_kernel,
        out_shape=(jax.ShapeDtypeStruct((N, Cb, 1), jnp.float32),
                   jax.ShapeDtypeStruct((N, Cb, 1), jnp.float32)),
        grid_spec=pltpu.PrefetchScalarGridSpec(
            num_scalar_prefetch=0,
            grid=(N, n_c),
            in_specs=[
                pl.BlockSpec((1, cb_blk, THW), lambda n, c: (n, c, 0)),
                pl.BlockSpec((1, cb_blk, THW), lambda n, c: (n, c, 0)),
                pl.BlockSpec((1, THW), lambda n, c: (0, 0)),
            ],
            out_specs=(
                pl.BlockSpec((1, cb_blk, 1), lambda n, c: (n, c, 0)),
                pl.BlockSpec((1, cb_blk, 1), lambda n, c: (n, c, 0)),
            ),
        ),
        compiler_params=pltpu.CompilerParams(
            dimension_semantics=("parallel", "parallel"),
            vmem_limit_bytes=32 * 1024 * 1024),
    )(rgb_k, dep_k, wvec)

    # Tiny dense layer in XLA: logits = f_rgb @ W_rgb^T + f_dep @ W_dep^T + b.
    # (bias is invariant under the averaging, so adding it once is exact.)
    w2 = w3d.reshape(C_out, 2 * Cb).astype(jnp.float32)            # [C_out, 2Cb]
    f_rgb = pooled_rgb[..., 0]                                      # [N, Cb]
    f_dep = pooled_dep[..., 0]
    logits = (f_rgb @ w2[:, :Cb].T + f_dep @ w2[:, Cb:].T
              + bias.astype(jnp.float32)[None, :])                  # [N, C_out]

    # torch.mean(..., dim=-1).squeeze()
    return jnp.squeeze(logits, axis=0) if N == 1 else logits


def reference_head(rgb_feat, depth_feat, w3d, bias):
    """Pure-JAX mirror of the PyTorch fusion head (eval mode: dropout = identity)."""
    feats = jnp.concatenate([rgb_feat, depth_feat], axis=1)         # [N, 2Cb, T, H, W]
    w2 = w3d.reshape(w3d.shape[0], -1)                              # [C_out, 2Cb]
    y = jnp.einsum('ncthw,oc->nothw', feats, w2) + bias[None, :, None, None, None]
    N, O, T, H, W = y.shape
    pooled = jnp.stack(
        [(y[:, :, t] + y[:, :, t + 1]).sum(axis=(-1, -2)) / (2.0 * H * W)
         for t in range(T - 1)], axis=-1)                           # [N, O, T-1]
    logits = pooled.mean(axis=-1)                                   # [N, O]
    return jnp.squeeze(logits, axis=0) if N == 1 else logits


if __name__ == "__main__":
    key = jax.random.PRNGKey(0)
    k_rgb, k_dep, k_w, k_b = jax.random.split(key, 4)

    # Shape-consistent with the module: Mixed_5c features are [N, 1024, T, 7, 7]
    # per branch; the logits conv expects 2048 input channels.
    N, Cb, T, H, W = 2, 1024, 4, 7, 7
    num_classes = 16

    # Backbones assumed to emit bf16 features (halves HBM traffic).
    rgb_feat = jax.random.normal(k_rgb, (N, Cb, T, H, W), dtype=jnp.float32).astype(jnp.bfloat16)
    depth_feat = jax.random.normal(k_dep, (N, Cb, T, H, W), dtype=jnp.float32).astype(jnp.bfloat16)
    logits_w = 0.01 * jax.random.normal(k_w, (num_classes, 2 * Cb, 1, 1, 1), dtype=jnp.float32)
    logits_b = 0.01 * jax.random.normal(k_b, (num_classes,), dtype=jnp.float32)

    out = mf_fusion_head(rgb_feat, depth_feat, logits_w, logits_b)
    out = jax.block_until_ready(out)

    ref = reference_head(rgb_feat.astype(jnp.float32), depth_feat.astype(jnp.float32),
                         logits_w, logits_b)
    assert out.shape == ref.shape == (N, num_classes), (out.shape, ref.shape)
    assert jnp.allclose(out, ref, rtol=2e-3, atol=2e-3), (
        "max abs err", float(jnp.max(jnp.abs(out - ref))))

    print("KERNEL_OK")
</pallas_src>

<mosaic_0001>
module attributes {stable_mosaic.version = 11 : i64} {
  func.func @_pooled_feature_kernel(%arg0: i32, %arg1: i32, %arg2: memref<1x512x196xbf16, #tpu.memory_space<vmem>>, %arg3: memref<1x512x196xbf16, #tpu.memory_space<vmem>>, %arg4: memref<1x196xf32, #tpu.memory_space<vmem>>, %arg5: memref<1x512x1xf32, #tpu.memory_space<vmem>>, %arg6: memref<1x512x1xf32, #tpu.memory_space<vmem>>) attributes {dimension_semantics = [#tpu.dimension_semantics<parallel>, #tpu.dimension_semantics<parallel>], iteration_bounds = array<i64: 2, 2>, scalar_prefetch = 0 : i64, scratch_operands = 0 : i64, tpu.core_type = #tpu.core_type<tc>, window_params = [{transform_indices = @transform_0, window_bounds = array<i64: 1, 512, 196>}, {transform_indices = @transform_1, window_bounds = array<i64: 1, 512, 196>}, {pipeline_mode = #tpu.pipeline_mode<synchronous>, transform_indices = @transform_2, window_bounds = array<i64: 1, 196>}, {transform_indices = @transform_3, window_bounds = array<i64: 1, 512, 1>}, {transform_indices = @transform_4, window_bounds = array<i64: 1, 512, 1>}]} {
    %c0 = arith.constant 0 : index
    %c0_0 = arith.constant 0 : index
    %0 = vector.load %arg4[%c0, %c0_0] : memref<1x196xf32, #tpu.memory_space<vmem>>, vector<1x196xf32>
    %c0_1 = arith.constant 0 : index
    %c0_2 = arith.constant 0 : index
    %c0_3 = arith.constant 0 : index
    %1 = vector.load %arg2[%c0_1, %c0_2, %c0_3] : memref<1x512x196xbf16, #tpu.memory_space<vmem>>, vector<1x512x196xbf16>
    %2 = vector.shape_cast %1 : vector<1x512x196xbf16> to vector<512x196xbf16>
    %3 = arith.extf %2 : vector<512x196xbf16> to vector<512x196xf32>
    %c0_4 = arith.constant 0 : index
    %c0_5 = arith.constant 0 : index
    %c0_6 = arith.constant 0 : index
    %4 = vector.load %arg3[%c0_4, %c0_5, %c0_6] : memref<1x512x196xbf16, #tpu.memory_space<vmem>>, vector<1x512x196xbf16>
    %5 = vector.shape_cast %4 : vector<1x512x196xbf16> to vector<512x196xbf16>
    %6 = arith.extf %5 : vector<512x196xbf16> to vector<512x196xf32>
    %7 = vector.broadcast %0 : vector<1x196xf32> to vector<512x196xf32>
    %8 = arith.mulf %3, %7 : vector<512x196xf32>
    %cst = arith.constant dense<0.000000e+00> : vector<512xf32>
    %9 = vector.multi_reduction <add>, %8, %cst [1] : vector<512x196xf32> to vector<512xf32>
    %10 = vector.shape_cast %9 : vector<512xf32> to vector<512x1xf32>
    %11 = vector.broadcast %0 : vector<1x196xf32> to vector<512x196xf32>
    %12 = arith.mulf %6, %11 : vector<512x196xf32>
    %cst_7 = arith.constant dense<0.000000e+00> : vector<512xf32>
    %13 = vector.multi_reduction <add>, %12, %cst_7 [1] : vector<512x196xf32> to vector<512xf32>
    %14 = vector.shape_cast %13 : vector<512xf32> to vector<512x1xf32>
    %15 = vector.shape_cast %10 : vector<512x1xf32> to vector<1x512x1xf32>
    %c0_8 = arith.constant 0 : index
    %c0_9 = arith.constant 0 : index
    %c0_10 = arith.constant 0 : index
    %16 = vector.load %arg5[%c0_8, %c0_9, %c0_10] : memref<1x512x1xf32, #tpu.memory_space<vmem>>, vector<1x512x1xf32>
    tpu.vector_store %arg5[%c0_8, %c0_9, %c0_10], %15 {strides = array<i32>} : memref<1x512x1xf32, #tpu.memory_space<vmem>>, vector<1x512x1xf32>,
    %17 = vector.shape_cast %14 : vector<512x1xf32> to vector<1x512x1xf32>
    %c0_11 = arith.constant 0 : index
    %c0_12 = arith.constant 0 : index
    %c0_13 = arith.constant 0 : index
    %18 = vector.load %arg6[%c0_11, %c0_12, %c0_13] : memref<1x512x1xf32, #tpu.memory_space<vmem>>, vector<1x512x1xf32>
    tpu.vector_store %arg6[%c0_11, %c0_12, %c0_13], %17 {strides = array<i32>} : memref<1x512x1xf32, #tpu.memory_space<vmem>>, vector<1x512x1xf32>,
    return
  }
  func.func @transform_0(%arg0: i32, %arg1: i32) -> (i32, i32, i32) {
    %c0_i32 = arith.constant 0 : i32
    %c0_i32_0 = arith.constant 0 : i32
    return %arg0, %arg1, %c0_i32 : i32, i32, i32
  }
  func.func @transform_1(%arg0: i32, %arg1: i32) -> (i32, i32, i32) {
    %c0_i32 = arith.constant 0 : i32
    %c0_i32_0 = arith.constant 0 : i32
    return %arg0, %arg1, %c0_i32 : i32, i32, i32
  }
  func.func @transform_2(%arg0: i32, %arg1: i32) -> (i32, i32) {
    %c0_i32 = arith.constant 0 : i32
    %c0_i32_0 = arith.constant 0 : i32
    %c0_i32_1 = arith.constant 0 : i32
    return %c0_i32, %c0_i32_0 : i32, i32
  }
  func.func @transform_3(%arg0: i32, %arg1: i32) -> (i32, i32, i32) {
    %c0_i32 = arith.constant 0 : i32
    %c0_i32_0 = arith.constant 0 : i32
    return %arg0, %arg1, %c0_i32 : i32, i32, i32
  }
  func.func @transform_4(%arg0: i32, %arg1: i32) -> (i32, i32, i32) {
    %c0_i32 = arith.constant 0 : i32
    %c0_i32_0 = arith.constant 0 : i32
    return %arg0, %arg1, %c0_i32 : i32, i32, i32
  }
}

</mosaic_0001>

<llo_original>
// kernel: tpu_custom_call.1
$region0: #{tpu_custom_call.1}
  #allocation0 [shape = 'u32[]', space=smem, size = 0x4, offset = 0x4, fixed_abs, tag = 'smem constant byte address 0x4 - core index']
  #allocation1 [shape = 'u32[72,128]{1,0:T(1,128)}', space=vmem, size = 0x9000, scoped, tag = 'internal scratch']
  %s0 = inlined_call_operand.vmem [shape: bf16[2,1024,196], index: 0, kind: input, shape index: {}]
  %s1 = inlined_call_operand.vmem [shape: bf16[2,1024,196], index: 1, kind: input, shape index: {}]
  %s2 = inlined_call_operand.vmem [shape: f32[1,196], index: 2, kind: input, shape index: {}]
  %s3 = inlined_call_operand.vmem [shape: f32[2,1024,1], index: 3, kind: output, shape index: {0}]
  %s4 = inlined_call_operand.vmem [shape: f32[2,1024,1], index: 4, kind: output, shape index: {1}]
  %5 = xla_tuple %s3, %s4
  %s6 = sld [smem:[#allocation0]]
  $region53: #{tpu_custom_call.1} parent=0
    _
  %s8 = ssub.s32 1, %s6
  %s9 = scalar_select 0, %s8, %s6
  loop: start=0, step=1, limit=6
  $region2: #{tpu_custom_call.1} parent=0 // loop_pre_header
    _
  $region3: #{tpu_custom_call.1} parent=0 // loop_header
    %s11 = sphi 0, %s15
    %p12 = scmp.ge.s32.totalorder %s11, 6
    %s18 = sphi 0, %s30
    %s19 = sphi 0, %s26
    %s20 = sphi 0, %s18
    %s21 = sphi 0, %s19
    %s22 = sphi 0, %s20
    %s23 = sphi 0, %s21
    %s35 = sphi 0, %s37
    %s38 = sphi 0, %s35
    %s39 = sphi 0, %s38
    %s55 = sphi 0, %s39
    %s63 = sphi 0, %s65
    %s66 = sphi 0, %s63
    %s67 = sphi 0, %s66
    %s83 = sphi 0, %s67
    %s87 = sphi 0, %s87
    %s89 = sphi 0, %s87
    %s90 = sphi 0, %s89
    %s104 = sphi 0, %s90
    %s112 = sphi 0, %s114
    %s115 = sphi 0, %s112
    %s116 = sphi 0, %s115
    %s132 = sphi 0, %s116
    %s140 = sphi 0, %s142
    %s143 = sphi 0, %s140
    %s144 = sphi 0, %s143
    %s160 = sphi 0, %s144
  $region4: #{tpu_custom_call.1} parent=0 // loop_header_branch
    %14 = sbr.rel (%p12) target = $region8
  $region5: #{tpu_custom_call.1} parent=0 // loop_body
    %s16 = ssub.s32 %s11, 1
    %s17 = ssub.s32 %s11, 2
    %s24 = sadd.s32 1, %s19
    %p25 = scmp.ge.s32.totalorder %s24, 2
    %s26 = scalar_select %p25, 0, %s24
    %s27 = sadd.s32 1, %s18
    %s28 = scalar_select %p25, %s27, %s18
    %p29 = scmp.ge.s32.totalorder %s28, 2
    %s30 = scalar_select %p29, 0, %s28
    %s31 = ssub.s32 %s18, %s30
    %s32 = ssub.s32 %s19, %s26
    %s33 = sor.u32 %s31, %s32
    %p34 = scmp.eq.s32.totalorder %s33, 0
    %s36 = sadd.s32 %s35, 1
    %s37 = scalar_select %p34, %s35, %s36
    %p40 = pneg %p34
    %p41 = scmp.eq.s32.totalorder %s11, 3
    %p42 = por %p40, %p41
    %p43 = scmp.ne.s32.totalorder %s35, %s38
    %p44 = scmp.eq.s32.totalorder %s11, 0
    %p45 = por %p43, %p44
    %p46 = scmp.ne.s32.totalorder %s35, %s38
    %p47 = scmp.eq.s32.totalorder %s16, 3
    %p48 = por %p46, %p47
    %p49 = scmp.ne.s32.totalorder %s38, %s39
    %p50 = scmp.eq.s32.totalorder %s16, 0
    %p51 = por %p49, %p50
    %p52 = scmp.ne.s32.totalorder %s38, %s39
    %p53 = scmp.eq.s32.totalorder %s17, 3
    %p54 = por %p52, %p53
    %p56 = scmp.ne.s32.totalorder %s39, %s55
    %p57 = scmp.eq.s32.totalorder %s17, 0
    %p58 = por %p56, %p57
    %s59 = ssub.s32 %s18, %s30
    %s60 = ssub.s32 %s19, %s26
    %s61 = sor.u32 %s59, %s60
    %p62 = scmp.eq.s32.totalorder %s61, 0
    %s64 = sadd.s32 %s63, 1
    %s65 = scalar_select %p62, %s63, %s64
    %p68 = pneg %p62
    %p69 = scmp.eq.s32.totalorder %s11, 3
    %p70 = por %p68, %p69
    %p71 = scmp.ne.s32.totalorder %s63, %s66
    %p72 = scmp.eq.s32.totalorder %s11, 0
    %p73 = por %p71, %p72
    %p74 = scmp.ne.s32.totalorder %s63, %s66
    %p75 = scmp.eq.s32.totalorder %s16, 3
    %p76 = por %p74, %p75
    %p77 = scmp.ne.s32.totalorder %s66, %s67
    %p78 = scmp.eq.s32.totalorder %s16, 0
    %p79 = por %p77, %p78
    %p80 = scmp.ne.s32.totalorder %s66, %s67
    %p81 = scmp.eq.s32.totalorder %s17, 3
    %p82 = por %p80, %p81
    %p84 = scmp.ne.s32.totalorder %s67, %s83
    %p85 = scmp.eq.s32.totalorder %s17, 0
    %p86 = por %p84, %p85
    %s88 = sadd.s32 %s87, 1
    %p91 = scmp.eq.s32.totalorder %s11, 3
    %p92 = scmp.ne.s32.totalorder %s87, %s89
    %p93 = scmp.eq.s32.totalorder %s11, 0
    %p94 = por %p92, %p93
    %p95 = scmp.ne.s32.totalorder %s87, %s89
    %p96 = scmp.eq.s32.totalorder %s16, 3
    %p97 = por %p95, %p96
    %p98 = scmp.ne.s32.totalorder %s89, %s90
    %p99 = scmp.eq.s32.totalorder %s16, 0
    %p100 = por %p98, %p99
    %p101 = scmp.ne.s32.totalorder %s89, %s90
    %p102 = scmp.eq.s32.totalorder %s17, 3
    %p103 = por %p101, %p102
    %p105 = scmp.ne.s32.totalorder %s90, %s104
    %p106 = scmp.eq.s32.totalorder %s17, 0
    %p107 = por %p105, %p106
    %s108 = ssub.s32 %s18, %s30
    %s109 = ssub.s32 %s19, %s26
    %s110 = sor.u32 %s108, %s109
    %p111 = scmp.eq.s32.totalorder %s110, 0
    %s113 = sadd.s32 %s112, 1
    %s114 = scalar_select %p111, %s112, %s113
    %p117 = pneg %p111
    %p118 = scmp.eq.s32.totalorder %s11, 3
    %p119 = por %p117, %p118
    %p120 = scmp.ne.s32.totalorder %s112, %s115
    %p121 = scmp.eq.s32.totalorder %s11, 0
    %p122 = por %p120, %p121
    %p123 = scmp.ne.s32.totalorder %s112, %s115
    %p124 = scmp.eq.s32.totalorder %s16, 3
    %p125 = por %p123, %p124
    %p126 = scmp.ne.s32.totalorder %s115, %s116
    %p127 = scmp.eq.s32.totalorder %s16, 0
    %p128 = por %p126, %p127
    %p129 = scmp.ne.s32.totalorder %s115, %s116
    %p130 = scmp.eq.s32.totalorder %s17, 3
    %p131 = por %p129, %p130
    %p133 = scmp.ne.s32.totalorder %s116, %s132
    %p134 = scmp.eq.s32.totalorder %s17, 0
    %p135 = por %p133, %p134
    %s136 = ssub.s32 %s18, %s30
    %s137 = ssub.s32 %s19, %s26
    %s138 = sor.u32 %s136, %s137
    %p139 = scmp.eq.s32.totalorder %s138, 0
    %s141 = sadd.s32 %s140, 1
    %s142 = scalar_select %p139, %s140, %s141
    %p145 = pneg %p139
    %p146 = scmp.eq.s32.totalorder %s11, 3
    %p147 = por %p145, %p146
    %p148 = scmp.ne.s32.totalorder %s140, %s143
    %p149 = scmp.eq.s32.totalorder %s11, 0
    %p150 = por %p148, %p149
    %p151 = scmp.ne.s32.totalorder %s140, %s143
    %p152 = scmp.eq.s32.totalorder %s16, 3
    %p153 = por %p151, %p152
    %p154 = scmp.ne.s32.totalorder %s143, %s144
    %p155 = scmp.eq.s32.totalorder %s16, 0
    %p156 = por %p154, %p155
    %p157 = scmp.ne.s32.totalorder %s143, %s144
    %p158 = scmp.eq.s32.totalorder %s17, 3
    %p159 = por %p157, %p158
    %p161 = scmp.ne.s32.totalorder %s144, %s160
    %p162 = scmp.eq.s32.totalorder %s17, 0
    %p163 = por %p161, %p162
    %p164 = scmp.le.s32.totalorder 1, %s11
    %p165 = scmp.lt.s32.totalorder %s11, 5
    %p166 = pnand %p164, %p165
    %p167 = pneg %p166
    // Predicated region
    $region9: #{tpu_custom_call.1} parent=5 // pred_check
      _
    $region10: #{tpu_custom_call.1} parent=5 // pred_check_branch
      %169 = sbr.rel (%p166) target = $region12
    $region11: #{tpu_custom_call.1} parent=5 // pred_region
      %s170 = ssub.s32 %s11, 1
      // Predicated region
      $region13: #{tpu_custom_call.1} parent=11 // pred_check
        %p171 = pneg %p100
      $region14: #{tpu_custom_call.1} parent=11 // pred_check_branch
        %173 = sbr.rel (%p171) target = $region16
      $region15: #{tpu_custom_call.1} parent=11 // pred_region
        _
      $region16: #{tpu_custom_call.1} parent=11 // pred_fallthru
        _
    $region12: #{tpu_custom_call.1} parent=5 // pred_fallthru
      _
    %p174 = scmp.lt.s32.totalorder %s11, 4
    // Predicated region
    $region17: #{tpu_custom_call.1} parent=5 // pred_check
      %p175 = pneg %p174
    $region18: #{tpu_custom_call.1} parent=5 // pred_check_branch
      %177 = sbr.rel (%p175) target = $region20
    $region19: #{tpu_custom_call.1} parent=5 // pred_region
      // Predicated region
      $region21: #{tpu_custom_call.1} parent=19 // pred_check
        %p178 = pneg %p45
      $region22: #{tpu_custom_call.1} parent=19 // pred_check_branch
        %180 = sbr.rel (%p178) target = $region24
      $region23: #{tpu_custom_call.1} parent=19 // pred_region
        %s181 = smul.u32 64, %s19
        %p182 = scmp.lt.s32.totalorder %s18, 1
        %s183 = scalar_select %p182, %s18, 1
        %p184 = scmp.lt.s32.totalorder %s181, 127
        %s185 = scalar_select %p184, %s181, 127
        %s186 = smul.addr %s185, 2
        %s187 = smul.addr %s183, 256
        %s188 = sadd.s32 %s186, %s187
        %s189 = smul.addr %s188, 4
        %s190 = scalar_lea.vmem %s0, %s189
        %s191 = smul.u32 64, %s19
      $region24: #{tpu_custom_call.1} parent=19 // pred_fallthru
        _
      // Predicated region
      $region25: #{tpu_custom_call.1} parent=19 // pred_check
        %p192 = pneg %p73
      $region26: #{tpu_custom_call.1} parent=19 // pred_check_branch
        %194 = sbr.rel (%p192) target = $region28
      $region27: #{tpu_custom_call.1} parent=19 // pred_region
        %s195 = smul.u32 64, %s19
        %p196 = scmp.lt.s32.totalorder %s18, 1
        %s197 = scalar_select %p196, %s18, 1
        %p198 = scmp.lt.s32.totalorder %s195, 127
        %s199 = scalar_select %p198, %s195, 127
        %s200 = smul.addr %s199, 2
        %s201 = smul.addr %s197, 256
        %s202 = sadd.s32 %s200, %s201
        %s203 = smul.addr %s202, 4
        %s204 = scalar_lea.vmem %s1, %s203
        %s205 = smul.u32 64, %s19
      $region28: #{tpu_custom_call.1} parent=19 // pred_fallthru
        _
    $region20: #{tpu_custom_call.1} parent=5 // pred_fallthru
      _
    %p206 = scmp.le.s32.totalorder 1, %s11
    %p207 = scmp.lt.s32.totalorder %s11, 5
    %p208 = pnand %p206, %p207
    %p209 = pneg %p208
    // Predicated region
    $region29: #{tpu_custom_call.1} parent=5 // pred_check
      _
    $region30: #{tpu_custom_call.1} parent=5 // pred_check_branch
      %211 = sbr.rel (%p208) target = $region32
    $region31: #{tpu_custom_call.1} parent=5 // pred_region
      %s212 = ssub.s32 %s11, 1
      %s213 = smul.u32 64, %s21
      %p214 = scmp.lt.s32.totalorder %s20, 1
      %s215 = scalar_select %p214, %s20, 1
      %p216 = scmp.lt.s32.totalorder %s213, 127
      %s217 = scalar_select %p216, %s213, 127
      %s218 = smul.addr %s217, 2
      %s219 = smul.addr %s215, 256
      %s220 = sadd.s32 %s218, %s219
      %s221 = smul.addr %s220, 4
      %s222 = scalar_lea.vmem %s0, %s221
      %p223 = pneg %p51
      %p224 = pneg %p48
      %s225 = smul.u32 64, %s21
      %p226 = scmp.lt.s32.totalorder %s20, 1
      %s227 = scalar_select %p226, %s20, 1
      %p228 = scmp.lt.s32.totalorder %s225, 127
      %s229 = scalar_select %p228, %s225, 127
      %s230 = smul.addr %s229, 2
      %s231 = smul.addr %s227, 256
      %s232 = sadd.s32 %s230, %s231
      %s233 = smul.addr %s232, 4
      %s234 = scalar_lea.vmem %s1, %s233
      %p235 = pneg %p79
      %p236 = pneg %p76
      %p237 = pneg %p100
      %p238 = pneg %p97
      %p239 = pneg %p128
      %p240 = pneg %p125
      %s241 = smul.u32 64, %s21
      %p242 = scmp.lt.s32.totalorder %s20, 1
      %s243 = scalar_select %p242, %s20, 1
      %p244 = scmp.lt.s32.totalorder %s241, 127
      %s245 = scalar_select %p244, %s241, 127
      %s246 = smul.addr %s243, 128
      %s247 = sadd.s32 %s245, %s246
      %s248 = smul.addr %s247, 8
      %s249 = scalar_lea.vmem %s3, %s248
      %p250 = pneg %p156
      %p251 = pneg %p153
      %s252 = smul.u32 64, %s21
      %p253 = scmp.lt.s32.totalorder %s20, 1
      %s254 = scalar_select %p253, %s20, 1
      %p255 = scmp.lt.s32.totalorder %s252, 127
      %s256 = scalar_select %p255, %s252, 127
      %s257 = smul.addr %s254, 128
      %s258 = sadd.s32 %s256, %s257
      %s259 = smul.addr %s258, 8
      %s260 = scalar_lea.vmem %s4, %s259
      %s261 = smul.u32 64, %s21
      %p262 = scmp.lt.s32.totalorder %s20, 1
      %s263 = scalar_select %p262, %s20, 1
      %p264 = scmp.lt.s32.totalorder %s261, 127
      %s265 = scalar_select %p264, %s261, 127
      %s266 = smul.addr %s265, 2
      %s267 = smul.addr %s263, 256
      %s268 = sadd.s32 %s266, %s267
      %s269 = smul.addr %s268, 4
      %s270 = scalar_lea.vmem %s0, %s269
      %s271 = smul.u32 64, %s21
      %s272 = smul.u32 64, %s21
      %p273 = scmp.lt.s32.totalorder %s20, 1
      %s274 = scalar_select %p273, %s20, 1
      %p275 = scmp.lt.s32.totalorder %s272, 127
      %s276 = scalar_select %p275, %s272, 127
      %s277 = smul.addr %s276, 2
      %s278 = smul.addr %s274, 256
      %s279 = sadd.s32 %s277, %s278
      %s280 = smul.addr %s279, 4
      %s281 = scalar_lea.vmem %s1, %s280
      %s282 = smul.u32 64, %s21
      %s283 = smul.u32 64, %s21
      %p284 = scmp.lt.s32.totalorder %s20, 1
      %s285 = scalar_select %p284, %s20, 1
      %p286 = scmp.lt.s32.totalorder %s283, 127
      %s287 = scalar_select %p286, %s283, 127
      %s288 = smul.addr %s285, 128
      %s289 = sadd.s32 %s287, %s288
      %s290 = smul.addr %s289, 8
      %s291 = scalar_lea.vmem %s3, %s290
      %s292 = smul.u32 64, %s21
      %s293 = smul.u32 64, %s21
      %p294 = scmp.lt.s32.totalorder %s20, 1
      %s295 = scalar_select %p294, %s20, 1
      %p296 = scmp.lt.s32.totalorder %s293, 127
      %s297 = scalar_select %p296, %s293, 127
      %s298 = smul.addr %s295, 128
      %s299 = sadd.s32 %s297, %s298
      %s300 = smul.addr %s299, 8
      %s301 = scalar_lea.vmem %s4, %s300
      %s302 = smul.u32 64, %s21
      %v303 = vld [vmem:[%s2] sm:$0x3]
      %v304 = vld [vmem:[%s270] sm:$0xff]
      %v305 = vld [vmem:[%s270 + $0x8] sm:$0xff]
      %v306 = vld [vmem:[%s270 + $0x10] sm:$0xff]
      %v307 = vld [vmem:[%s270 + $0x18] sm:$0xff]
      %v308 = vld [vmem:[%s270 + $0x20] sm:$0xff]
      %v309 = vld [vmem:[%s270 + $0x28] sm:$0xff]
      %v310 = vld [vmem:[%s270 + $0x30] sm:$0xff]
      %v311 = vld [vmem:[%s270 + $0x38] sm:$0xff]
      %v312 = vld [vmem:[%s270 + $0x40] sm:$0xff]
      %v313 = vld [vmem:[%s270 + $0x48] sm:$0xff]
      %v314 = vld [vmem:[%s270 + $0x50] sm:$0xff]
      %v315 = vld [vmem:[%s270 + $0x58] sm:$0xff]
      %v316 = vld [vmem:[%s270 + $0x60] sm:$0xff]
      %v317 = vld [vmem:[%s270 + $0x68] sm:$0xff]
      %v318 = vld [vmem:[%s270 + $0x70] sm:$0xff]
      %v319 = vld [vmem:[%s270 + $0x78] sm:$0xff]
      %v320 = vld [vmem:[%s270 + $0x80] sm:$0xff]
      %v321 = vld [vmem:[%s270 + $0x88] sm:$0xff]
      %v322 = vld [vmem:[%s270 + $0x90] sm:$0xff]
      %v323 = vld [vmem:[%s270 + $0x98] sm:$0xff]
      %v324 = vld [vmem:[%s270 + $0xa0] sm:$0xff]
      %v325 = vld [vmem:[%s270 + $0xa8] sm:$0xff]
      %v326 = vld [vmem:[%s270 + $0xb0] sm:$0xff]
      %v327 = vld [vmem:[%s270 + $0xb8] sm:$0xff]
      %v328 = vld [vmem:[%s270 + $0xc0] sm:$0xff]
      %v329 = vld [vmem:[%s270 + $0xc8] sm:$0xff]
      %v330 = vld [vmem:[%s270 + $0xd0] sm:$0xff]
      %v331 = vld [vmem:[%s270 + $0xd8] sm:$0xff]
      %v332 = vld [vmem:[%s270 + $0xe0] sm:$0xff]
      %v333 = vld [vmem:[%s270 + $0xe8] sm:$0xff]
      %v334 = vld [vmem:[%s270 + $0xf0] sm:$0xff]
      %v335 = vld [vmem:[%s270 + $0xf8] sm:$0xff]
      %v336 = vld [vmem:[%s270 + $0x100] sm:$0xff]
      %v337 = vld [vmem:[%s270 + $0x108] sm:$0xff]
      %v338 = vld [vmem:[%s270 + $0x110] sm:$0xff]
      %v339 = vld [vmem:[%s270 + $0x118] sm:$0xff]
      %v340 = vld [vmem:[%s270 + $0x120] sm:$0xff]
      %v341 = vld [vmem:[%s270 + $0x128] sm:$0xff]
      %v342 = vld [vmem:[%s270 + $0x130] sm:$0xff]
      %v343 = vld [vmem:[%s270 + $0x138] sm:$0xff]
      %v344 = vld [vmem:[%s270 + $0x140] sm:$0xff]
      %v345 = vld [vmem:[%s270 + $0x148] sm:$0xff]
      %v346 = vld [vmem:[%s270 + $0x150] sm:$0xff]
      %v347 = vld [vmem:[%s270 + $0x158] sm:$0xff]
      %v348 = vld [vmem:[%s270 + $0x160] sm:$0xff]
      %v349 = vld [vmem:[%s270 + $0x168] sm:$0xff]
      %v350 = vld [vmem:[%s270 + $0x170] sm:$0xff]
      %v351 = vld [vmem:[%s270 + $0x178] sm:$0xff]
      %v352 = vld [vmem:[%s270 + $0x180] sm:$0xff]
      %v353 = vld [vmem:[%s270 + $0x188] sm:$0xff]
      %v354 = vld [vmem:[%s270 + $0x190] sm:$0xff]
      %v355 = vld [vmem:[%s270 + $0x198] sm:$0xff]
      %v356 = vld [vmem:[%s270 + $0x1a0] sm:$0xff]
      %v357 = vld [vmem:[%s270 + $0x1a8] sm:$0xff]
      %v358 = vld [vmem:[%s270 + $0x1b0] sm:$0xff]
      %v359 = vld [vmem:[%s270 + $0x1b8] sm:$0xff]
      %v360 = vld [vmem:[%s270 + $0x1c0] sm:$0xff]
      %v361 = vld [vmem:[%s270 + $0x1c8] sm:$0xff]
      %v362 = vld [vmem:[%s270 + $0x1d0] sm:$0xff]
      %v363 = vld [vmem:[%s270 + $0x1d8] sm:$0xff]
      %v364 = vld [vmem:[%s270 + $0x1e0] sm:$0xff]
      %v365 = vld [vmem:[%s270 + $0x1e8] sm:$0xff]
      %v366 = vld [vmem:[%s270 + $0x1f0] sm:$0xff]
      %v367 = vld [vmem:[%s270 + $0x1f8] sm:$0xff]
      %v368 = vunpack.c.l.bf16 %v304
      %v369 = vunpack.c.h.bf16 %v304
      %v370 = vunpack.c.l.bf16 %v305
      %v371 = vunpack.c.h.bf16 %v305
      %v372 = vunpack.c.l.bf16 %v306
      %v373 = vunpack.c.h.bf16 %v306
      %v374 = vunpack.c.l.bf16 %v307
      %v375 = vunpack.c.h.bf16 %v307
      %v376 = vunpack.c.l.bf16 %v308
      %v377 = vunpack.c.h.bf16 %v308
      %v378 = vunpack.c.l.bf16 %v309
      %v379 = vunpack.c.h.bf16 %v309
      %v380 = vunpack.c.l.bf16 %v310
      %v381 = vunpack.c.h.bf16 %v310
      %v382 = vunpack.c.l.bf16 %v311
      %v383 = vunpack.c.h.bf16 %v311
      %v384 = vunpack.c.l.bf16 %v312
      %v385 = vunpack.c.h.bf16 %v312
      %v386 = vunpack.c.l.bf16 %v313
      %v387 = vunpack.c.h.bf16 %v313
      %v388 = vunpack.c.l.bf16 %v314
      %v389 = vunpack.c.h.bf16 %v314
      %v390 = vunpack.c.l.bf16 %v315
      %v391 = vunpack.c.h.bf16 %v315
      %v392 = vunpack.c.l.bf16 %v316
      %v393 = vunpack.c.h.bf16 %v316
      %v394 = vunpack.c.l.bf16 %v317
      %v395 = vunpack.c.h.bf16 %v317
      %v396 = vunpack.c.l.bf16 %v318
      %v397 = vunpack.c.h.bf16 %v318
      %v398 = vunpack.c.l.bf16 %v319
      %v399 = vunpack.c.h.bf16 %v319
      %v400 = vunpack.c.l.bf16 %v320
      %v401 = vunpack.c.h.bf16 %v320
      %v402 = vunpack.c.l.bf16 %v321
      %v403 = vunpack.c.h.bf16 %v321
      %v404 = vunpack.c.l.bf16 %v322
      %v405 = vunpack.c.h.bf16 %v322
      %v406 = vunpack.c.l.bf16 %v323
      %v407 = vunpack.c.h.bf16 %v323
      %v408 = vunpack.c.l.bf16 %v324
      %v409 = vunpack.c.h.bf16 %v324
      %v410 = vunpack.c.l.bf16 %v325
      %v411 = vunpack.c.h.bf16 %v325
      %v412 = vunpack.c.l.bf16 %v326
      %v413 = vunpack.c.h.bf16 %v326
      %v414 = vunpack.c.l.bf16 %v327
      %v415 = vunpack.c.h.bf16 %v327
      %v416 = vunpack.c.l.bf16 %v328
      %v417 = vunpack.c.h.bf16 %v328
      %v418 = vunpack.c.l.bf16 %v329
      %v419 = vunpack.c.h.bf16 %v329
      %v420 = vunpack.c.l.bf16 %v330
      %v421 = vunpack.c.h.bf16 %v330
      %v422 = vunpack.c.l.bf16 %v331
      %v423 = vunpack.c.h.bf16 %v331
      %v424 = vunpack.c.l.bf16 %v332
      %v425 = vunpack.c.h.bf16 %v332
      %v426 = vunpack.c.l.bf16 %v333
      %v427 = vunpack.c.h.bf16 %v333
      %v428 = vunpack.c.l.bf16 %v334
      %v429 = vunpack.c.h.bf16 %v334
      %v430 = vunpack.c.l.bf16 %v335
      %v431 = vunpack.c.h.bf16 %v335
      %v432 = vunpack.c.l.bf16 %v336
      %v433 = vunpack.c.h.bf16 %v336
      %v434 = vunpack.c.l.bf16 %v337
      %v435 = vunpack.c.h.bf16 %v337
      %v436 = vunpack.c.l.bf16 %v338
      %v437 = vunpack.c.h.bf16 %v338
      %v438 = vunpack.c.l.bf16 %v339
      %v439 = vunpack.c.h.bf16 %v339
      %v440 = vunpack.c.l.bf16 %v340
      %v441 = vunpack.c.h.bf16 %v340
      %v442 = vunpack.c.l.bf16 %v341
      %v443 = vunpack.c.h.bf16 %v341
      %v444 = vunpack.c.l.bf16 %v342
      %v445 = vunpack.c.h.bf16 %v342
      %v446 = vunpack.c.l.bf16 %v343
      %v447 = vunpack.c.h.bf16 %v343
      %v448 = vunpack.c.l.bf16 %v344
      %v449 = vunpack.c.h.bf16 %v344
      %v450 = vunpack.c.l.bf16 %v345
      %v451 = vunpack.c.h.bf16 %v345
      %v452 = vunpack.c.l.bf16 %v346
      %v453 = vunpack.c.h.bf16 %v346
      %v454 = vunpack.c.l.bf16 %v347
      %v455 = vunpack.c.h.bf16 %v347
      %v456 = vunpack.c.l.bf16 %v348
      %v457 = vunpack.c.h.bf16 %v348
      %v458 = vunpack.c.l.bf16 %v349
      %v459 = vunpack.c.h.bf16 %v349
      %v460 = vunpack.c.l.bf16 %v350
      %v461 = vunpack.c.h.bf16 %v350
      %v462 = vunpack.c.l.bf16 %v351
      %v463 = vunpack.c.h.bf16 %v351
      %v464 = vunpack.c.l.bf16 %v352
      %v465 = vunpack.c.h.bf16 %v352
      %v466 = vunpack.c.l.bf16 %v353
      %v467 = vunpack.c.h.bf16 %v353
      %v468 = vunpack.c.l.bf16 %v354
      %v469 = vunpack.c.h.bf16 %v354
      %v470 = vunpack.c.l.bf16 %v355
      %v471 = vunpack.c.h.bf16 %v355
      %v472 = vunpack.c.l.bf16 %v356
      %v473 = vunpack.c.h.bf16 %v356
      %v474 = vunpack.c.l.bf16 %v357
      %v475 = vunpack.c.h.bf16 %v357
      %v476 = vunpack.c.l.bf16 %v358
      %v477 = vunpack.c.h.bf16 %v358
      %v478 = vunpack.c.l.bf16 %v359
      %v479 = vunpack.c.h.bf16 %v359
      %v480 = vunpack.c.l.bf16 %v360
      %v481 = vunpack.c.h.bf16 %v360
      %v482 = vunpack.c.l.bf16 %v361
      %v483 = vunpack.c.h.bf16 %v361
      %v484 = vunpack.c.l.bf16 %v362
      %v485 = vunpack.c.h.bf16 %v362
      %v486 = vunpack.c.l.bf16 %v363
      %v487 = vunpack.c.h.bf16 %v363
      %v488 = vunpack.c.l.bf16 %v364
      %v489 = vunpack.c.h.bf16 %v364
      %v490 = vunpack.c.l.bf16 %v365
      %v491 = vunpack.c.h.bf16 %v365
      %v492 = vunpack.c.l.bf16 %v366
      %v493 = vunpack.c.h.bf16 %v366
      %v494 = vunpack.c.l.bf16 %v367
      %v495 = vunpack.c.h.bf16 %v367
      %v496 = vld [vmem:[%s281] sm:$0xff]
      %v497 = vld [vmem:[%s281 + $0x8] sm:$0xff]
      %v498 = vld [vmem:[%s281 + $0x10] sm:$0xff]
      %v499 = vld [vmem:[%s281 + $0x18] sm:$0xff]
      %v500 = vld [vmem:[%s281 + $0x20] sm:$0xff]
      %v501 = vld [vmem:[%s281 + $0x28] sm:$0xff]
      %v502 = vld [vmem:[%s281 + $0x30] sm:$0xff]
      %v503 = vld [vmem:[%s281 + $0x38] sm:$0xff]
      %v504 = vld [vmem:[%s281 + $0x40] sm:$0xff]
      %v505 = vld [vmem:[%s281 + $0x48] sm:$0xff]
      %v506 = vld [vmem:[%s281 + $0x50] sm:$0xff]
      %v507 = vld [vmem:[%s281 + $0x58] sm:$0xff]
      %v508 = vld [vmem:[%s281 + $0x60] sm:$0xff]
      %v509 = vld [vmem:[%s281 + $0x68] sm:$0xff]
      %v510 = vld [vmem:[%s281 + $0x70] sm:$0xff]
      %v511 = vld [vmem:[%s281 + $0x78] sm:$0xff]
      %v512 = vld [vmem:[%s281 + $0x80] sm:$0xff]
      %v513 = vld [vmem:[%s281 + $0x88] sm:$0xff]
      %v514 = vld [vmem:[%s281 + $0x90] sm:$0xff]
      %v515 = vld [vmem:[%s281 + $0x98] sm:$0xff]
      %v516 = vld [vmem:[%s281 + $0xa0] sm:$0xff]
      %v517 = vld [vmem:[%s281 + $0xa8] sm:$0xff]
      %v518 = vld [vmem:[%s281 + $0xb0] sm:$0xff]
      %v519 = vld [vmem:[%s281 + $0xb8] sm:$0xff]
      %v520 = vld [vmem:[%s281 + $0xc0] sm:$0xff]
      %v521 = vld [vmem:[%s281 + $0xc8] sm:$0xff]
      %v522 = vld [vmem:[%s281 + $0xd0] sm:$0xff]
      %v523 = vld [vmem:[%s281 + $0xd8] sm:$0xff]
      %v524 = vld [vmem:[%s281 + $0xe0] sm:$0xff]
      %v525 = vld [vmem:[%s281 + $0xe8] sm:$0xff]
      %v526 = vld [vmem:[%s281 + $0xf0] sm:$0xff]
      %v527 = vld [vmem:[%s281 + $0xf8] sm:$0xff]
      %v528 = vld [vmem:[%s281 + $0x100] sm:$0xff]
      %v529 = vld [vmem:[%s281 + $0x108] sm:$0xff]
      %v530 = vld [vmem:[%s281 + $0x110] sm:$0xff]
      %v531 = vld [vmem:[%s281 + $0x118] sm:$0xff]
      %v532 = vld [vmem:[%s281 + $0x120] sm:$0xff]
      %v533 = vld [vmem:[%s281 + $0x128] sm:$0xff]
      %v534 = vld [vmem:[%s281 + $0x130] sm:$0xff]
      %v535 = vld [vmem:[%s281 + $0x138] sm:$0xff]
      %v536 = vld [vmem:[%s281 + $0x140] sm:$0xff]
      %v537 = vld [vmem:[%s281 + $0x148] sm:$0xff]
      %v538 = vld [vmem:[%s281 + $0x150] sm:$0xff]
      %v539 = vld [vmem:[%s281 + $0x158] sm:$0xff]
      %v540 = vld [vmem:[%s281 + $0x160] sm:$0xff]
      %v541 = vld [vmem:[%s281 + $0x168] sm:$0xff]
      %v542 = vld [vmem:[%s281 + $0x170] sm:$0xff]
      %v543 = vld [vmem:[%s281 + $0x178] sm:$0xff]
      %v544 = vld [vmem:[%s281 + $0x180] sm:$0xff]
      %v545 = vld [vmem:[%s281 + $0x188] sm:$0xff]
      %v546 = vld [vmem:[%s281 + $0x190] sm:$0xff]
      %v547 = vld [vmem:[%s281 + $0x198] sm:$0xff]
      %v548 = vld [vmem:[%s281 + $0x1a0] sm:$0xff]
      %v549 = vld [vmem:[%s281 + $0x1a8] sm:$0xff]
      %v550 = vld [vmem:[%s281 + $0x1b0] sm:$0xff]
      %v551 = vld [vmem:[%s281 + $0x1b8] sm:$0xff]
      %v552 = vld [vmem:[%s281 + $0x1c0] sm:$0xff]
      %v553 = vld [vmem:[%s281 + $0x1c8] sm:$0xff]
      %v554 = vld [vmem:[%s281 + $0x1d0] sm:$0xff]
      %v555 = vld [vmem:[%s281 + $0x1d8] sm:$0xff]
      %v556 = vld [vmem:[%s281 + $0x1e0] sm:$0xff]
      %v557 = vld [vmem:[%s281 + $0x1e8] sm:$0xff]
      %v558 = vld [vmem:[%s281 + $0x1f0] sm:$0xff]
      %v559 = vld [vmem:[%s281 + $0x1f8] sm:$0xff]
      %v560 = vunpack.c.l.bf16 %v496
      %v561 = vunpack.c.h.bf16 %v496
      %v562 = vunpack.c.l.bf16 %v497
      %v563 = vunpack.c.h.bf16 %v497
      %v564 = vunpack.c.l.bf16 %v498
      %v565 = vunpack.c.h.bf16 %v498
      %v566 = vunpack.c.l.bf16 %v499
      %v567 = vunpack.c.h.bf16 %v499
      %v568 = vunpack.c.l.bf16 %v500
      %v569 = vunpack.c.h.bf16 %v500
      %v570 = vunpack.c.l.bf16 %v501
      %v571 = vunpack.c.h.bf16 %v501
      %v572 = vunpack.c.l.bf16 %v502
      %v573 = vunpack.c.h.bf16 %v502
      %v574 = vunpack.c.l.bf16 %v503
      %v575 = vunpack.c.h.bf16 %v503
      %v576 = vunpack.c.l.bf16 %v504
      %v577 = vunpack.c.h.bf16 %v504
      %v578 = vunpack.c.l.bf16 %v505
      %v579 = vunpack.c.h.bf16 %v505
      %v580 = vunpack.c.l.bf16 %v506
      %v581 = vunpack.c.h.bf16 %v506
      %v582 = vunpack.c.l.bf16 %v507
      %v583 = vunpack.c.h.bf16 %v507
      %v584 = vunpack.c.l.bf16 %v508
      %v585 = vunpack.c.h.bf16 %v508
      %v586 = vunpack.c.l.bf16 %v509
      %v587 = vunpack.c.h.bf16 %v509
      %v588 = vunpack.c.l.bf16 %v510
      %v589 = vunpack.c.h.bf16 %v510
      %v590 = vunpack.c.l.bf16 %v511
      %v591 = vunpack.c.h.bf16 %v511
      %v592 = vunpack.c.l.bf16 %v512
      %v593 = vunpack.c.h.bf16 %v512
      %v594 = vunpack.c.l.bf16 %v513
      %v595 = vunpack.c.h.bf16 %v513
      %v596 = vunpack.c.l.bf16 %v514
      %v597 = vunpack.c.h.bf16 %v514
      %v598 = vunpack.c.l.bf16 %v515
      %v599 = vunpack.c.h.bf16 %v515
      %v600 = vunpack.c.l.bf16 %v516
      %v601 = vunpack.c.h.bf16 %v516
      %v602 = vunpack.c.l.bf16 %v517
      %v603 = vunpack.c.h.bf16 %v517
      %v604 = vunpack.c.l.bf16 %v518
      %v605 = vunpack.c.h.bf16 %v518
      %v606 = vunpack.c.l.bf16 %v519
      %v607 = vunpack.c.h.bf16 %v519
      %v608 = vunpack.c.l.bf16 %v520
      %v609 = vunpack.c.h.bf16 %v520
      %v610 = vunpack.c.l.bf16 %v521
      %v611 = vunpack.c.h.bf16 %v521
      %v612 = vunpack.c.l.bf16 %v522
      %v613 = vunpack.c.h.bf16 %v522
      %v614 = vunpack.c.l.bf16 %v523
      %v615 = vunpack.c.h.bf16 %v523
      %v616 = vunpack.c.l.bf16 %v524
      %v617 = vunpack.c.h.bf16 %v524
      %v618 = vunpack.c.l.bf16 %v525
      %v619 = vunpack.c.h.bf16 %v525
      %v620 = vunpack.c.l.bf16 %v526
      %v621 = vunpack.c.h.bf16 %v526
      %v622 = vunpack.c.l.bf16 %v527
      %v623 = vunpack.c.h.bf16 %v527
      %v624 = vunpack.c.l.bf16 %v528
      %v625 = vunpack.c.h.bf16 %v528
      %v626 = vunpack.c.l.bf16 %v529
      %v627 = vunpack.c.h.bf16 %v529
      %v628 = vunpack.c.l.bf16 %v530
      %v629 = vunpack.c.h.bf16 %v530
      %v630 = vunpack.c.l.bf16 %v531
      %v631 = vunpack.c.h.bf16 %v531
      %v632 = vunpack.c.l.bf16 %v532
      %v633 = vunpack.c.h.bf16 %v532
      %v634 = vunpack.c.l.bf16 %v533
      %v635 = vunpack.c.h.bf16 %v533
      %v636 = vunpack.c.l.bf16 %v534
      %v637 = vunpack.c.h.bf16 %v534
      %v638 = vunpack.c.l.bf16 %v535
      %v639 = vunpack.c.h.bf16 %v535
      %v640 = vunpack.c.l.bf16 %v536
      %v641 = vunpack.c.h.bf16 %v536
      %v642 = vunpack.c.l.bf16 %v537
      %v643 = vunpack.c.h.bf16 %v537
      %v644 = vunpack.c.l.bf16 %v538
      %v645 = vunpack.c.h.bf16 %v538
      %v646 = vunpack.c.l.bf16 %v539
      %v647 = vunpack.c.h.bf16 %v539
      %v648 = vunpack.c.l.bf16 %v540
      %v649 = vunpack.c.h.bf16 %v540
      %v650 = vunpack.c.l.bf16 %v541
      %v651 = vunpack.c.h.bf16 %v541
      %v652 = vunpack.c.l.bf16 %v542
      %v653 = vunpack.c.h.bf16 %v542
      %v654 = vunpack.c.l.bf16 %v543
      %v655 = vunpack.c.h.bf16 %v543
      %v656 = vunpack.c.l.bf16 %v544
      %v657 = vunpack.c.h.bf16 %v544
      %v658 = vunpack.c.l.bf16 %v545
      %v659 = vunpack.c.h.bf16 %v545
      %v660 = vunpack.c.l.bf16 %v546
      %v661 = vunpack.c.h.bf16 %v546
      %v662 = vunpack.c.l.bf16 %v547
      %v663 = vunpack.c.h.bf16 %v547
      %v664 = vunpack.c.l.bf16 %v548
      %v665 = vunpack.c.h.bf16 %v548
      %v666 = vunpack.c.l.bf16 %v549
      %v667 = vunpack.c.h.bf16 %v549
      %v668 = vunpack.c.l.bf16 %v550
      %v669 = vunpack.c.h.bf16 %v550
      %v670 = vunpack.c.l.bf16 %v551
      %v671 = vunpack.c.h.bf16 %v551
      %v672 = vunpack.c.l.bf16 %v552
      %v673 = vunpack.c.h.bf16 %v552
      %v674 = vunpack.c.l.bf16 %v553
      %v675 = vunpack.c.h.bf16 %v553
      %v676 = vunpack.c.l.bf16 %v554
      %v677 = vunpack.c.h.bf16 %v554
      %v678 = vunpack.c.l.bf16 %v555
      %v679 = vunpack.c.h.bf16 %v555
      %v680 = vunpack.c.l.bf16 %v556
      %v681 = vunpack.c.h.bf16 %v556
      %v682 = vunpack.c.l.bf16 %v557
      %v683 = vunpack.c.h.bf16 %v557
      %v684 = vunpack.c.l.bf16 %v558
      %v685 = vunpack.c.h.bf16 %v558
      %v686 = vunpack.c.l.bf16 %v559
      %v687 = vunpack.c.h.bf16 %v559
      %v689 = vperm.slane %v303, 0
      %v690 = vperm.slane %v303, 1
      %v693 = vmul.f32 %v368, %v689
      %v694 = vmul.f32 %v369, %v690
      %v695 = vmul.f32 %v370, %v689
      %v696 = vmul.f32 %v371, %v690
      %v697 = vmul.f32 %v372, %v689
      %v698 = vmul.f32 %v373, %v690
      %v699 = vmul.f32 %v374, %v689
      %v700 = vmul.f32 %v375, %v690
      %v701 = vmul.f32 %v376, %v689
      %v702 = vmul.f32 %v377, %v690
      %v703 = vmul.f32 %v378, %v689
      %v704 = vmul.f32 %v379, %v690
      %v705 = vmul.f32 %v380, %v689
      %v706 = vmul.f32 %v381, %v690
      %v707 = vmul.f32 %v382, %v689
      %v708 = vmul.f32 %v383, %v690
      %v709 = vmul.f32 %v384, %v689
      %v710 = vmul.f32 %v385, %v690
      %v711 = vmul.f32 %v386, %v689
      %v712 = vmul.f32 %v387, %v690
      %v713 = vmul.f32 %v388, %v689
      %v714 = vmul.f32 %v389, %v690
      %v715 = vmul.f32 %v390, %v689
      %v716 = vmul.f32 %v391, %v690
      %v717 = vmul.f32 %v392, %v689
      %v718 = vmul.f32 %v393, %v690
      %v719 = vmul.f32 %v394, %v689
      %v720 = vmul.f32 %v395, %v690
      %v721 = vmul.f32 %v396, %v689
      %v722 = vmul.f32 %v397, %v690
      %v723 = vmul.f32 %v398, %v689
      %v724 = vmul.f32 %v399, %v690
      %v725 = vmul.f32 %v400, %v689
      %v726 = vmul.f32 %v401, %v690
      %v727 = vmul.f32 %v402, %v689
      %v728 = vmul.f32 %v403, %v690
      %v729 = vmul.f32 %v404, %v689
      %v730 = vmul.f32 %v405, %v690
      %v731 = vmul.f32 %v406, %v689
      %v732 = vmul.f32 %v407, %v690
      %v733 = vmul.f32 %v408, %v689
      %v734 = vmul.f32 %v409, %v690
      %v735 = vmul.f32 %v410, %v689
      %v736 = vmul.f32 %v411, %v690
      %v737 = vmul.f32 %v412, %v689
      %v738 = vmul.f32 %v413, %v690
      %v739 = vmul.f32 %v414, %v689
      %v740 = vmul.f32 %v415, %v690
      %v741 = vmul.f32 %v416, %v689
      %v742 = vmul.f32 %v417, %v690
      %v743 = vmul.f32 %v418, %v689
      %v744 = vmul.f32 %v419, %v690
      %v745 = vmul.f32 %v420, %v689
      %v746 = vmul.f32 %v421, %v690
      %v747 = vmul.f32 %v422, %v689
      %v748 = vmul.f32 %v423, %v690
      %v749 = vmul.f32 %v424, %v689
      %v750 = vmul.f32 %v425, %v690
      %v751 = vmul.f32 %v426, %v689
      %v752 = vmul.f32 %v427, %v690
      %v753 = vmul.f32 %v428, %v689
      %v754 = vmul.f32 %v429, %v690
      %v755 = vmul.f32 %v430, %v689
      %v756 = vmul.f32 %v431, %v690
      %v757 = vmul.f32 %v432, %v689
      %v758 = vmul.f32 %v433, %v690
      %v759 = vmul.f32 %v434, %v689
      %v760 = vmul.f32 %v435, %v690
      %v761 = vmul.f32 %v436, %v689
      %v762 = vmul.f32 %v437, %v690
      %v763 = vmul.f32 %v438, %v689
      %v764 = vmul.f32 %v439, %v690
      %v765 = vmul.f32 %v440, %v689
      %v766 = vmul.f32 %v441, %v690
      %v767 = vmul.f32 %v442, %v689
      %v768 = vmul.f32 %v443, %v690
      %v769 = vmul.f32 %v444, %v689
      %v770 = vmul.f32 %v445, %v690
      %v771 = vmul.f32 %v446, %v689
      %v772 = vmul.f32 %v447, %v690
      %v773 = vmul.f32 %v448, %v689
      %v774 = vmul.f32 %v449, %v690
      %v775 = vmul.f32 %v450, %v689
      %v776 = vmul.f32 %v451, %v690
      %v777 = vmul.f32 %v452, %v689
      %v778 = vmul.f32 %v453, %v690
      %v779 = vmul.f32 %v454, %v689
      %v780 = vmul.f32 %v455, %v690
      %v781 = vmul.f32 %v456, %v689
      %v782 = vmul.f32 %v457, %v690
      %v783 = vmul.f32 %v458, %v689
      %v784 = vmul.f32 %v459, %v690
      %v785 = vmul.f32 %v460, %v689
      %v786 = vmul.f32 %v461, %v690
      %v787 = vmul.f32 %v462, %v689
      %v788 = vmul.f32 %v463, %v690
      %v789 = vmul.f32 %v464, %v689
      %v790 = vmul.f32 %v465, %v690
      %v791 = vmul.f32 %v466, %v689
      %v792 = vmul.f32 %v467, %v690
      %v793 = vmul.f32 %v468, %v689
      %v794 = vmul.f32 %v469, %v690
      %v795 = vmul.f32 %v470, %v689
      %v796 = vmul.f32 %v471, %v690
      %v797 = vmul.f32 %v472, %v689
      %v798 = vmul.f32 %v473, %v690
      %v799 = vmul.f32 %v474, %v689
      %v800 = vmul.f32 %v475, %v690
      %v801 = vmul.f32 %v476, %v689
      %v802 = vmul.f32 %v477, %v690
      %v803 = vmul.f32 %v478, %v689
      %v804 = vmul.f32 %v479, %v690
      %v805 = vmul.f32 %v480, %v689
      %v806 = vmul.f32 %v481, %v690
      %v807 = vmul.f32 %v482, %v689
      %v808 = vmul.f32 %v483, %v690
      %v809 = vmul.f32 %v484, %v689
      %v810 = vmul.f32 %v485, %v690
      %v811 = vmul.f32 %v486, %v689
      %v812 = vmul.f32 %v487, %v690
      %v813 = vmul.f32 %v488, %v689
      %v814 = vmul.f32 %v489, %v690
      %v815 = vmul.f32 %v490, %v689
      %v816 = vmul.f32 %v491, %v690
      %v817 = vmul.f32 %v492, %v689
      %v818 = vmul.f32 %v493, %v690
      %v819 = vmul.f32 %v494, %v689
      %v820 = vmul.f32 %v495, %v690
      %vm821 = vcmask 556032
      %v822 = vsel %vm821, %v694, 0.0
      %v823 = vadd.f32 %v693, %v822
      %824 = vadd.xlane.f32.xlu0 %v823
      %v825 = vpop.xlane.xlu0 %824
      %v826 = vsel %vm821, %v696, 0.0
      %v827 = vadd.f32 %v695, %v826
      %828 = vadd.xlane.f32.xlu0 %v827
      %v829 = vpop.xlane.xlu0 %828
      %v830 = vsel %vm821, %v698, 0.0
      %v831 = vadd.f32 %v697, %v830
      %832 = vadd.xlane.f32.xlu0 %v831
      %v833 = vpop.xlane.xlu0 %832
      %v834 = vsel %vm821, %v700, 0.0
      %v835 = vadd.f32 %v699, %v834
      %836 = vadd.xlane.f32.xlu0 %v835
      %v837 = vpop.xlane.xlu0 %836
      %v838 = vsel %vm821, %v702, 0.0
      %v839 = vadd.f32 %v701, %v838
      %840 = vadd.xlane.f32.xlu0 %v839
      %v841 = vpop.xlane.xlu0 %840
      %v842 = vsel %vm821, %v704, 0.0
      %v843 = vadd.f32 %v703, %v842
      %844 = vadd.xlane.f32.xlu0 %v843
      %v845 = vpop.xlane.xlu0 %844
      %v846 = vsel %vm821, %v706, 0.0
      %v847 = vadd.f32 %v705, %v846
      %848 = vadd.xlane.f32.xlu0 %v847
      %v849 = vpop.xlane.xlu0 %848
      %v850 = vsel %vm821, %v708, 0.0
      %v851 = vadd.f32 %v707, %v850
      %852 = vadd.xlane.f32.xlu0 %v851
      %v853 = vpop.xlane.xlu0 %852
      %v854 = vsel %vm821, %v710, 0.0
      %v855 = vadd.f32 %v709, %v854
      %856 = vadd.xlane.f32.xlu0 %v855
      %v857 = vpop.xlane.xlu0 %856
      %v858 = vsel %vm821, %v712, 0.0
      %v859 = vadd.f32 %v711, %v858
      %860 = vadd.xlane.f32.xlu0 %v859
      %v861 = vpop.xlane.xlu0 %860
      %v862 = vsel %vm821, %v714, 0.0
      %v863 = vadd.f32 %v713, %v862
      %864 = vadd.xlane.f32.xlu0 %v863
      %v865 = vpop.xlane.xlu0 %864
      %v866 = vsel %vm821, %v716, 0.0
      %v867 = vadd.f32 %v715, %v866
      %868 = vadd.xlane.f32.xlu0 %v867
      %v869 = vpop.xlane.xlu0 %868
      %v870 = vsel %vm821, %v718, 0.0
      %v871 = vadd.f32 %v717, %v870
      %872 = vadd.xlane.f32.xlu0 %v871
      %v873 = vpop.xlane.xlu0 %872
      %v874 = vsel %vm821, %v720, 0.0
      %v875 = vadd.f32 %v719, %v874
      %876 = vadd.xlane.f32.xlu0 %v875
      %v877 = vpop.xlane.xlu0 %876
      %v878 = vsel %vm821, %v722, 0.0
      %v879 = vadd.f32 %v721, %v878
      %880 = vadd.xlane.f32.xlu0 %v879
      %v881 = vpop.xlane.xlu0 %880
      %v882 = vsel %vm821, %v724, 0.0
      %v883 = vadd.f32 %v723, %v882
      %884 = vadd.xlane.f32.xlu0 %v883
      %v885 = vpop.xlane.xlu0 %884
      %v886 = vsel %vm821, %v726, 0.0
      %v887 = vadd.f32 %v725, %v886
      %888 = vadd.xlane.f32.xlu0 %v887
      %v889 = vpop.xlane.xlu0 %888
      %v890 = vsel %vm821, %v728, 0.0
      %v891 = vadd.f32 %v727, %v890
      %892 = vadd.xlane.f32.xlu0 %v891
      %v893 = vpop.xlane.xlu0 %892
      %v894 = vsel %vm821, %v730, 0.0
      %v895 = vadd.f32 %v729, %v894
      %896 = vadd.xlane.f32.xlu0 %v895
      %v897 = vpop.xlane.xlu0 %896
      %v898 = vsel %vm821, %v732, 0.0
      %v899 = vadd.f32 %v731, %v898
      %900 = vadd.xlane.f32.xlu0 %v899
      %v901 = vpop.xlane.xlu0 %900
      %v902 = vsel %vm821, %v734, 0.0
      %v903 = vadd.f32 %v733, %v902
      %904 = vadd.xlane.f32.xlu0 %v903
      %v905 = vpop.xlane.xlu0 %904
      %v906 = vsel %vm821, %v736, 0.0
      %v907 = vadd.f32 %v735, %v906
      %908 = vadd.xlane.f32.xlu0 %v907
      %v909 = vpop.xlane.xlu0 %908
      %v910 = vsel %vm821, %v738, 0.0
      %v911 = vadd.f32 %v737, %v910
      %912 = vadd.xlane.f32.xlu0 %v911
      %v913 = vpop.xlane.xlu0 %912
      %v914 = vsel %vm821, %v740, 0.0
      %v915 = vadd.f32 %v739, %v914
      %916 = vadd.xlane.f32.xlu0 %v915
      %v917 = vpop.xlane.xlu0 %916
      %v918 = vsel %vm821, %v742, 0.0
      %v919 = vadd.f32 %v741, %v918
      %920 = vadd.xlane.f32.xlu0 %v919
      %v921 = vpop.xlane.xlu0 %920
      %v922 = vsel %vm821, %v744, 0.0
      %v923 = vadd.f32 %v743, %v922
      %924 = vadd.xlane.f32.xlu0 %v923
      %v925 = vpop.xlane.xlu0 %924
      %v926 = vsel %vm821, %v746, 0.0
      %v927 = vadd.f32 %v745, %v926
      %928 = vadd.xlane.f32.xlu0 %v927
      %v929 = vpop.xlane.xlu0 %928
      %v930 = vsel %vm821, %v748, 0.0
      %v931 = vadd.f32 %v747, %v930
      %932 = vadd.xlane.f32.xlu0 %v931
      %v933 = vpop.xlane.xlu0 %932
      %v934 = vsel %vm821, %v750, 0.0
      %v935 = vadd.f32 %v749, %v934
      %936 = vadd.xlane.f32.xlu0 %v935
      %v937 = vpop.xlane.xlu0 %936
      %v938 = vsel %vm821, %v752, 0.0
      %v939 = vadd.f32 %v751, %v938
      %940 = vadd.xlane.f32.xlu0 %v939
      %v941 = vpop.xlane.xlu0 %940
      %v942 = vsel %vm821, %v754, 0.0
      %v943 = vadd.f32 %v753, %v942
      %944 = vadd.xlane.f32.xlu0 %v943
      %v945 = vpop.xlane.xlu0 %944
      %v946 = vsel %vm821, %v756, 0.0
      %v947 = vadd.f32 %v755, %v946
      %948 = vadd.xlane.f32.xlu0 %v947
      %v949 = vpop.xlane.xlu0 %948
      %v950 = vsel %vm821, %v758, 0.0
      %v951 = vadd.f32 %v757, %v950
      %952 = vadd.xlane.f32.xlu0 %v951
      %v953 = vpop.xlane.xlu0 %952
      %v954 = vsel %vm821, %v760, 0.0
      %v955 = vadd.f32 %v759, %v954
      %956 = vadd.xlane.f32.xlu0 %v955
      %v957 = vpop.xlane.xlu0 %956
      %v958 = vsel %vm821, %v762, 0.0
      %v959 = vadd.f32 %v761, %v958
      %960 = vadd.xlane.f32.xlu0 %v959
      %v961 = vpop.xlane.xlu0 %960
      %v962 = vsel %vm821, %v764, 0.0
      %v963 = vadd.f32 %v763, %v962
      %964 = vadd.xlane.f32.xlu0 %v963
      %v965 = vpop.xlane.xlu0 %964
      %v966 = vsel %vm821, %v766, 0.0
      %v967 = vadd.f32 %v765, %v966
      %968 = vadd.xlane.f32.xlu0 %v967
      %v969 = vpop.xlane.xlu0 %968
      %v970 = vsel %vm821, %v768, 0.0
      %v971 = vadd.f32 %v767, %v970
      %972 = vadd.xlane.f32.xlu0 %v971
      %v973 = vpop.xlane.xlu0 %972
      %v974 = vsel %vm821, %v770, 0.0
      %v975 = vadd.f32 %v769, %v974
      %976 = vadd.xlane.f32.xlu0 %v975
      %v977 = vpop.xlane.xlu0 %976
      %v978 = vsel %vm821, %v772, 0.0
      %v979 = vadd.f32 %v771, %v978
      %980 = vadd.xlane.f32.xlu0 %v979
      %v981 = vpop.xlane.xlu0 %980
      %v982 = vsel %vm821, %v774, 0.0
      %v983 = vadd.f32 %v773, %v982
      %984 = vadd.xlane.f32.xlu0 %v983
      %v985 = vpop.xlane.xlu0 %984
      %v986 = vsel %vm821, %v776, 0.0
      %v987 = vadd.f32 %v775, %v986
      %988 = vadd.xlane.f32.xlu0 %v987
      %v989 = vpop.xlane.xlu0 %988
      %v990 = vsel %vm821, %v778, 0.0
      %v991 = vadd.f32 %v777, %v990
      %992 = vadd.xlane.f32.xlu0 %v991
      %v993 = vpop.xlane.xlu0 %992
      %v994 = vsel %vm821, %v780, 0.0
      %v995 = vadd.f32 %v779, %v994
      %996 = vadd.xlane.f32.xlu0 %v995
      %v997 = vpop.xlane.xlu0 %996
      %v998 = vsel %vm821, %v782, 0.0
      %v999 = vadd.f32 %v781, %v998
      %1000 = vadd.xlane.f32.xlu0 %v999
      %v1001 = vpop.xlane.xlu0 %1000
      %v1002 = vsel %vm821, %v784, 0.0
      %v1003 = vadd.f32 %v783, %v1002
      %1004 = vadd.xlane.f32.xlu0 %v1003
      %v1005 = vpop.xlane.xlu0 %1004
      %v1006 = vsel %vm821, %v786, 0.0
      %v1007 = vadd.f32 %v785, %v1006
      %1008 = vadd.xlane.f32.xlu0 %v1007
      %v1009 = vpop.xlane.xlu0 %1008
      %v1010 = vsel %vm821, %v788, 0.0
      %v1011 = vadd.f32 %v787, %v1010
      %1012 = vadd.xlane.f32.xlu0 %v1011
      %v1013 = vpop.xlane.xlu0 %1012
      %v1014 = vsel %vm821, %v790, 0.0
      %v1015 = vadd.f32 %v789, %v1014
      %1016 = vadd.xlane.f32.xlu0 %v1015
      %v1017 = vpop.xlane.xlu0 %1016
      %v1018 = vsel %vm821, %v792, 0.0
      %v1019 = vadd.f32 %v791, %v1018
      %1020 = vadd.xlane.f32.xlu0 %v1019
      %v1021 = vpop.xlane.xlu0 %1020
      %v1022 = vsel %vm821, %v794, 0.0
      %v1023 = vadd.f32 %v793, %v1022
      %1024 = vadd.xlane.f32.xlu0 %v1023
      %v1025 = vpop.xlane.xlu0 %1024
      %v1026 = vsel %vm821, %v796, 0.0
      %v1027 = vadd.f32 %v795, %v1026
      %1028 = vadd.xlane.f32.xlu0 %v1027
      %v1029 = vpop.xlane.xlu0 %1028
      %v1030 = vsel %vm821, %v798, 0.0
      %v1031 = vadd.f32 %v797, %v1030
      %1032 = vadd.xlane.f32.xlu0 %v1031
      %v1033 = vpop.xlane.xlu0 %1032
      %v1034 = vsel %vm821, %v800, 0.0
      %v1035 = vadd.f32 %v799, %v1034
      %1036 = vadd.xlane.f32.xlu0 %v1035
      %v1037 = vpop.xlane.xlu0 %1036
      %v1038 = vsel %vm821, %v802, 0.0
      %v1039 = vadd.f32 %v801, %v1038
      %1040 = vadd.xlane.f32.xlu0 %v1039
      %v1041 = vpop.xlane.xlu0 %1040
      %v1042 = vsel %vm821, %v804, 0.0
      %v1043 = vadd.f32 %v803, %v1042
      %1044 = vadd.xlane.f32.xlu0 %v1043
      %v1045 = vpop.xlane.xlu0 %1044
      %v1046 = vsel %vm821, %v806, 0.0
      %v1047 = vadd.f32 %v805, %v1046
      %1048 = vadd.xlane.f32.xlu0 %v1047
      %v1049 = vpop.xlane.xlu0 %1048
      %v1050 = vsel %vm821, %v808, 0.0
      %v1051 = vadd.f32 %v807, %v1050
      %1052 = vadd.xlane.f32.xlu0 %v1051
      %v1053 = vpop.xlane.xlu0 %1052
      %v1054 = vsel %vm821, %v810, 0.0
      %v1055 = vadd.f32 %v809, %v1054
      %1056 = vadd.xlane.f32.xlu0 %v1055
      %v1057 = vpop.xlane.xlu0 %1056
      %v1058 = vsel %vm821, %v812, 0.0
      %v1059 = vadd.f32 %v811, %v1058
      %1060 = vadd.xlane.f32.xlu0 %v1059
      %v1061 = vpop.xlane.xlu0 %1060
      %v1062 = vsel %vm821, %v814, 0.0
      %v1063 = vadd.f32 %v813, %v1062
      %1064 = vadd.xlane.f32.xlu0 %v1063
      %v1065 = vpop.xlane.xlu0 %1064
      %v1066 = vsel %vm821, %v816, 0.0
      %v1067 = vadd.f32 %v815, %v1066
      %1068 = vadd.xlane.f32.xlu0 %v1067
      %v1069 = vpop.xlane.xlu0 %1068
      %v1070 = vsel %vm821, %v818, 0.0
      %v1071 = vadd.f32 %v817, %v1070
      %1072 = vadd.xlane.f32.xlu0 %v1071
      %v1073 = vpop.xlane.xlu0 %1072
      %v1074 = vsel %vm821, %v820, 0.0
      %v1075 = vadd.f32 %v819, %v1074
      %1076 = vadd.xlane.f32.xlu0 %v1075
      %v1077 = vpop.xlane.xlu0 %1076
      %v1078 = vmul.f32 %v560, %v689
      %v1079 = vmul.f32 %v561, %v690
      %v1080 = vmul.f32 %v562, %v689
      %v1081 = vmul.f32 %v563, %v690
      %v1082 = vmul.f32 %v564, %v689
      %v1083 = vmul.f32 %v565, %v690
      %v1084 = vmul.f32 %v566, %v689
      %v1085 = vmul.f32 %v567, %v690
      %v1086 = vmul.f32 %v568, %v689
      %v1087 = vmul.f32 %v569, %v690
      %v1088 = vmul.f32 %v570, %v689
      %v1089 = vmul.f32 %v571, %v690
      %v1090 = vmul.f32 %v572, %v689
      %v1091 = vmul.f32 %v573, %v690
      %v1092 = vmul.f32 %v574, %v689
      %v1093 = vmul.f32 %v575, %v690
      %v1094 = vmul.f32 %v576, %v689
      %v1095 = vmul.f32 %v577, %v690
      %v1096 = vmul.f32 %v578, %v689
      %v1097 = vmul.f32 %v579, %v690
      %v1098 = vmul.f32 %v580, %v689
      %v1099 = vmul.f32 %v581, %v690
      %v1100 = vmul.f32 %v582, %v689
      %v1101 = vmul.f32 %v583, %v690
      %v1102 = vmul.f32 %v584, %v689
      %v1103 = vmul.f32 %v585, %v690
      %v1104 = vmul.f32 %v586, %v689
      %v1105 = vmul.f32 %v587, %v690
      %v1106 = vmul.f32 %v588, %v689
      %v1107 = vmul.f32 %v589, %v690
      %v1108 = vmul.f32 %v590, %v689
      %v1109 = vmul.f32 %v591, %v690
      %v1110 = vmul.f32 %v592, %v689
      %v1111 = vmul.f32 %v593, %v690
      %v1112 = vmul.f32 %v594, %v689
      %v1113 = vmul.f32 %v595, %v690
      %v1114 = vmul.f32 %v596, %v689
      %v1115 = vmul.f32 %v597, %v690
      %v1116 = vmul.f32 %v598, %v689
      %v1117 = vmul.f32 %v599, %v690
      %v1118 = vmul.f32 %v600, %v689
      %v1119 = vmul.f32 %v601, %v690
      %v1120 = vmul.f32 %v602, %v689
      %v1121 = vmul.f32 %v603, %v690
      %v1122 = vmul.f32 %v604, %v689
      %v1123 = vmul.f32 %v605, %v690
      %v1124 = vmul.f32 %v606, %v689
      %v1125 = vmul.f32 %v607, %v690
      %v1126 = vmul.f32 %v608, %v689
      %v1127 = vmul.f32 %v609, %v690
      %v1128 = vmul.f32 %v610, %v689
      %v1129 = vmul.f32 %v611, %v690
      %v1130 = vmul.f32 %v612, %v689
      %v1131 = vmul.f32 %v613, %v690
      %v1132 = vmul.f32 %v614, %v689
      %v1133 = vmul.f32 %v615, %v690
      %v1134 = vmul.f32 %v616, %v689
      %v1135 = vmul.f32 %v617, %v690
      %v1136 = vmul.f32 %v618, %v689
      %v1137 = vmul.f32 %v619, %v690
      %v1138 = vmul.f32 %v620, %v689
      %v1139 = vmul.f32 %v621, %v690
      %v1140 = vmul.f32 %v622, %v689
      %v1141 = vmul.f32 %v623, %v690
      %v1142 = vmul.f32 %v624, %v689
      %v1143 = vmul.f32 %v625, %v690
      %v1144 = vmul.f32 %v626, %v689
      %v1145 = vmul.f32 %v627, %v690
      %v1146 = vmul.f32 %v628, %v689
      %v1147 = vmul.f32 %v629, %v690
      %v1148 = vmul.f32 %v630, %v689
      %v1149 = vmul.f32 %v631, %v690
      %v1150 = vmul.f32 %v632, %v689
      %v1151 = vmul.f32 %v633, %v690
      %v1152 = vmul.f32 %v634, %v689
      %v1153 = vmul.f32 %v635, %v690
      %v1154 = vmul.f32 %v636, %v689
      %v1155 = vmul.f32 %v637, %v690
      %v1156 = vmul.f32 %v638, %v689
      %v1157 = vmul.f32 %v639, %v690
      %v1158 = vmul.f32 %v640, %v689
      %v1159 = vmul.f32 %v641, %v690
      %v1160 = vmul.f32 %v642, %v689
      %v1161 = vmul.f32 %v643, %v690
      %v1162 = vmul.f32 %v644, %v689
      %v1163 = vmul.f32 %v645, %v690
      %v1164 = vmul.f32 %v646, %v689
      %v1165 = vmul.f32 %v647, %v690
      %v1166 = vmul.f32 %v648, %v689
      %v1167 = vmul.f32 %v649, %v690
      %v1168 = vmul.f32 %v650, %v689
      %v1169 = vmul.f32 %v651, %v690
      %v1170 = vmul.f32 %v652, %v689
      %v1171 = vmul.f32 %v653, %v690
      %v1172 = vmul.f32 %v654, %v689
      %v1173 = vmul.f32 %v655, %v690
      %v1174 = vmul.f32 %v656, %v689
      %v1175 = vmul.f32 %v657, %v690
      %v1176 = vmul.f32 %v658, %v689
      %v1177 = vmul.f32 %v659, %v690
      %v1178 = vmul.f32 %v660, %v689
      %v1179 = vmul.f32 %v661, %v690
      %v1180 = vmul.f32 %v662, %v689
      %v1181 = vmul.f32 %v663, %v690
      %v1182 = vmul.f32 %v664, %v689
      %v1183 = vmul.f32 %v665, %v690
      %v1184 = vmul.f32 %v666, %v689
      %v1185 = vmul.f32 %v667, %v690
      %v1186 = vmul.f32 %v668, %v689
      %v1187 = vmul.f32 %v669, %v690
      %v1188 = vmul.f32 %v670, %v689
      %v1189 = vmul.f32 %v671, %v690
      %v1190 = vmul.f32 %v672, %v689
      %v1191 = vmul.f32 %v673, %v690
      %v1192 = vmul.f32 %v674, %v689
      %v1193 = vmul.f32 %v675, %v690
      %v1194 = vmul.f32 %v676, %v689
      %v1195 = vmul.f32 %v677, %v690
      %v1196 = vmul.f32 %v678, %v689
      %v1197 = vmul.f32 %v679, %v690
      %v1198 = vmul.f32 %v680, %v689
      %v1199 = vmul.f32 %v681, %v690
      %v1200 = vmul.f32 %v682, %v689
      %v1201 = vmul.f32 %v683, %v690
      %v1202 = vmul.f32 %v684, %v689
      %v1203 = vmul.f32 %v685, %v690
      %v1204 = vmul.f32 %v686, %v689
      %v1205 = vmul.f32 %v687, %v690
      %v1206 = vsel %vm821, %v1079, 0.0
      %v1207 = vadd.f32 %v1078, %v1206
      %1208 = vadd.xlane.f32.xlu0 %v1207
      %v1209 = vpop.xlane.xlu0 %1208
      %v1210 = vsel %vm821, %v1081, 0.0
      %v1211 = vadd.f32 %v1080, %v1210
      %1212 = vadd.xlane.f32.xlu0 %v1211
      %v1213 = vpop.xlane.xlu0 %1212
      %v1214 = vsel %vm821, %v1083, 0.0
      %v1215 = vadd.f32 %v1082, %v1214
      %1216 = vadd.xlane.f32.xlu0 %v1215
      %v1217 = vpop.xlane.xlu0 %1216
      %v1218 = vsel %vm821, %v1085, 0.0
      %v1219 = vadd.f32 %v1084, %v1218
      %1220 = vadd.xlane.f32.xlu0 %v1219
      %v1221 = vpop.xlane.xlu0 %1220
      %v1222 = vsel %vm821, %v1087, 0.0
      %v1223 = vadd.f32 %v1086, %v1222
      %1224 = vadd.xlane.f32.xlu0 %v1223
      %v1225 = vpop.xlane.xlu0 %1224
      %v1226 = vsel %vm821, %v1089, 0.0
      %v1227 = vadd.f32 %v1088, %v1226
      %1228 = vadd.xlane.f32.xlu0 %v1227
      %v1229 = vpop.xlane.xlu0 %1228
      %v1230 = vsel %vm821, %v1091, 0.0
      %v1231 = vadd.f32 %v1090, %v1230
      %1232 = vadd.xlane.f32.xlu0 %v1231
      %v1233 = vpop.xlane.xlu0 %1232
      %v1234 = vsel %vm821, %v1093, 0.0
      %v1235 = vadd.f32 %v1092, %v1234
      %1236 = vadd.xlane.f32.xlu0 %v1235
      %v1237 = vpop.xlane.xlu0 %1236
      %v1238 = vsel %vm821, %v1095, 0.0
      %v1239 = vadd.f32 %v1094, %v1238
      %1240 = vadd.xlane.f32.xlu0 %v1239
      %v1241 = vpop.xlane.xlu0 %1240
      %v1242 = vsel %vm821, %v1097, 0.0
      %v1243 = vadd.f32 %v1096, %v1242
      %1244 = vadd.xlane.f32.xlu0 %v1243
      %v1245 = vpop.xlane.xlu0 %1244
      %v1246 = vsel %vm821, %v1099, 0.0
      %v1247 = vadd.f32 %v1098, %v1246
      %1248 = vadd.xlane.f32.xlu0 %v1247
      %v1249 = vpop.xlane.xlu0 %1248
      %v1250 = vsel %vm821, %v1101, 0.0
      %v1251 = vadd.f32 %v1100, %v1250
      %1252 = vadd.xlane.f32.xlu0 %v1251
      %v1253 = vpop.xlane.xlu0 %1252
      %v1254 = vsel %vm821, %v1103, 0.0
      %v1255 = vadd.f32 %v1102, %v1254
      %1256 = vadd.xlane.f32.xlu0 %v1255
      %v1257 = vpop.xlane.xlu0 %1256
      %v1258 = vsel %vm821, %v1105, 0.0
      %v1259 = vadd.f32 %v1104, %v1258
      %1260 = vadd.xlane.f32.xlu0 %v1259
      %v1261 = vpop.xlane.xlu0 %1260
      %v1262 = vsel %vm821, %v1107, 0.0
      %v1263 = vadd.f32 %v1106, %v1262
      %1264 = vadd.xlane.f32.xlu0 %v1263
      %v1265 = vpop.xlane.xlu0 %1264
      %v1266 = vsel %vm821, %v1109, 0.0
      %v1267 = vadd.f32 %v1108, %v1266
      %1268 = vadd.xlane.f32.xlu0 %v1267
      %v1269 = vpop.xlane.xlu0 %1268
      %v1270 = vsel %vm821, %v1111, 0.0
      %v1271 = vadd.f32 %v1110, %v1270
      %1272 = vadd.xlane.f32.xlu0 %v1271
      %v1273 = vpop.xlane.xlu0 %1272
      %v1274 = vsel %vm821, %v1113, 0.0
      %v1275 = vadd.f32 %v1112, %v1274
      %1276 = vadd.xlane.f32.xlu0 %v1275
      %v1277 = vpop.xlane.xlu0 %1276
      %v1278 = vsel %vm821, %v1115, 0.0
      %v1279 = vadd.f32 %v1114, %v1278
      %1280 = vadd.xlane.f32.xlu0 %v1279
      %v1281 = vpop.xlane.xlu0 %1280
      %v1282 = vsel %vm821, %v1117, 0.0
      %v1283 = vadd.f32 %v1116, %v1282
      %1284 = vadd.xlane.f32.xlu0 %v1283
      %v1285 = vpop.xlane.xlu0 %1284
      %v1286 = vsel %vm821, %v1119, 0.0
      %v1287 = vadd.f32 %v1118, %v1286
      %1288 = vadd.xlane.f32.xlu0 %v1287
      %v1289 = vpop.xlane.xlu0 %1288
      %v1290 = vsel %vm821, %v1121, 0.0
      %v1291 = vadd.f32 %v1120, %v1290
      %1292 = vadd.xlane.f32.xlu0 %v1291
      %v1293 = vpop.xlane.xlu0 %1292
      %v1294 = vsel %vm821, %v1123, 0.0
      %v1295 = vadd.f32 %v1122, %v1294
      %1296 = vadd.xlane.f32.xlu0 %v1295
      %v1297 = vpop.xlane.xlu0 %1296
      %v1298 = vsel %vm821, %v1125, 0.0
      %v1299 = vadd.f32 %v1124, %v1298
      %1300 = vadd.xlane.f32.xlu0 %v1299
      %v1301 = vpop.xlane.xlu0 %1300
      %v1302 = vsel %vm821, %v1127, 0.0
      %v1303 = vadd.f32 %v1126, %v1302
      %1304 = vadd.xlane.f32.xlu0 %v1303
      %v1305 = vpop.xlane.xlu0 %1304
      %v1306 = vsel %vm821, %v1129, 0.0
      %v1307 = vadd.f32 %v1128, %v1306
      %1308 = vadd.xlane.f32.xlu0 %v1307
      %v1309 = vpop.xlane.xlu0 %1308
      %v1310 = vsel %vm821, %v1131, 0.0
      %v1311 = vadd.f32 %v1130, %v1310
      %1312 = vadd.xlane.f32.xlu0 %v1311
      %v1313 = vpop.xlane.xlu0 %1312
      %v1314 = vsel %vm821, %v1133, 0.0
      %v1315 = vadd.f32 %v1132, %v1314
      %1316 = vadd.xlane.f32.xlu0 %v1315
      %v1317 = vpop.xlane.xlu0 %1316
      %v1318 = vsel %vm821, %v1135, 0.0
      %v1319 = vadd.f32 %v1134, %v1318
      %1320 = vadd.xlane.f32.xlu0 %v1319
      %v1321 = vpop.xlane.xlu0 %1320
      %v1322 = vsel %vm821, %v1137, 0.0
      %v1323 = vadd.f32 %v1136, %v1322
      %1324 = vadd.xlane.f32.xlu0 %v1323
      %v1325 = vpop.xlane.xlu0 %1324
      %v1326 = vsel %vm821, %v1139, 0.0
      %v1327 = vadd.f32 %v1138, %v1326
      %1328 = vadd.xlane.f32.xlu0 %v1327
      %v1329 = vpop.xlane.xlu0 %1328
      %v1330 = vsel %vm821, %v1141, 0.0
      %v1331 = vadd.f32 %v1140, %v1330
      %1332 = vadd.xlane.f32.xlu0 %v1331
      %v1333 = vpop.xlane.xlu0 %1332
      %v1334 = vsel %vm821, %v1143, 0.0
      %v1335 = vadd.f32 %v1142, %v1334
      %1336 = vadd.xlane.f32.xlu0 %v1335
      %v1337 = vpop.xlane.xlu0 %1336
      %v1338 = vsel %vm821, %v1145, 0.0
      %v1339 = vadd.f32 %v1144, %v1338
      %1340 = vadd.xlane.f32.xlu0 %v1339
      %v1341 = vpop.xlane.xlu0 %1340
      %v1342 = vsel %vm821, %v1147, 0.0
      %v1343 = vadd.f32 %v1146, %v1342
      %1344 = vadd.xlane.f32.xlu0 %v1343
      %v1345 = vpop.xlane.xlu0 %1344
      %v1346 = vsel %vm821, %v1149, 0.0
      %v1347 = vadd.f32 %v1148, %v1346
      %1348 = vadd.xlane.f32.xlu0 %v1347
      %v1349 = vpop.xlane.xlu0 %1348
      %v1350 = vsel %vm821, %v1151, 0.0
      %v1351 = vadd.f32 %v1150, %v1350
      %1352 = vadd.xlane.f32.xlu0 %v1351
      %v1353 = vpop.xlane.xlu0 %1352
      %v1354 = vsel %vm821, %v1153, 0.0
      %v1355 = vadd.f32 %v1152, %v1354
      %1356 = vadd.xlane.f32.xlu0 %v1355
      %v1357 = vpop.xlane.xlu0 %1356
      %v1358 = vsel %vm821, %v1155, 0.0
      %v1359 = vadd.f32 %v1154, %v1358
      %1360 = vadd.xlane.f32.xlu0 %v1359
      %v1361 = vpop.xlane.xlu0 %1360
      %v1362 = vsel %vm821, %v1157, 0.0
      %v1363 = vadd.f32 %v1156, %v1362
      %1364 = vadd.xlane.f32.xlu0 %v1363
      %v1365 = vpop.xlane.xlu0 %1364
      %v1366 = vsel %vm821, %v1159, 0.0
      %v1367 = vadd.f32 %v1158, %v1366
      %1368 = vadd.xlane.f32.xlu0 %v1367
      %v1369 = vpop.xlane.xlu0 %1368
      %v1370 = vsel %vm821, %v1161, 0.0
      %v1371 = vadd.f32 %v1160, %v1370
      %1372 = vadd.xlane.f32.xlu0 %v1371
      %v1373 = vpop.xlane.xlu0 %1372
      %v1374 = vsel %vm821, %v1163, 0.0
      %v1375 = vadd.f32 %v1162, %v1374
      %1376 = vadd.xlane.f32.xlu0 %v1375
      %v1377 = vpop.xlane.xlu0 %1376
      %v1378 = vsel %vm821, %v1165, 0.0
      %v1379 = vadd.f32 %v1164, %v1378
      %1380 = vadd.xlane.f32.xlu0 %v1379
      %v1381 = vpop.xlane.xlu0 %1380
      %v1382 = vsel %vm821, %v1167, 0.0
      %v1383 = vadd.f32 %v1166, %v1382
      %1384 = vadd.xlane.f32.xlu0 %v1383
      %v1385 = vpop.xlane.xlu0 %1384
      %v1386 = vsel %vm821, %v1169, 0.0
      %v1387 = vadd.f32 %v1168, %v1386
      %1388 = vadd.xlane.f32.xlu0 %v1387
      %v1389 = vpop.xlane.xlu0 %1388
      %v1390 = vsel %vm821, %v1171, 0.0
      %v1391 = vadd.f32 %v1170, %v1390
      %1392 = vadd.xlane.f32.xlu0 %v1391
      %v1393 = vpop.xlane.xlu0 %1392
      %v1394 = vsel %vm821, %v1173, 0.0
      %v1395 = vadd.f32 %v1172, %v1394
      %1396 = vadd.xlane.f32.xlu0 %v1395
      %v1397 = vpop.xlane.xlu0 %1396
      %v1398 = vsel %vm821, %v1175, 0.0
      %v1399 = vadd.f32 %v1174, %v1398
      %1400 = vadd.xlane.f32.xlu0 %v1399
      %v1401 = vpop.xlane.xlu0 %1400
      %v1402 = vsel %vm821, %v1177, 0.0
      %v1403 = vadd.f32 %v1176, %v1402
      %1404 = vadd.xlane.f32.xlu0 %v1403
      %v1405 = vpop.xlane.xlu0 %1404
      %v1406 = vsel %vm821, %v1179, 0.0
      %v1407 = vadd.f32 %v1178, %v1406
      %1408 = vadd.xlane.f32.xlu0 %v1407
      %v1409 = vpop.xlane.xlu0 %1408
      %v1410 = vsel %vm821, %v1181, 0.0
      %v1411 = vadd.f32 %v1180, %v1410
      %1412 = vadd.xlane.f32.xlu0 %v1411
      %v1413 = vpop.xlane.xlu0 %1412
      %v1414 = vsel %vm821, %v1183, 0.0
      %v1415 = vadd.f32 %v1182, %v1414
      %1416 = vadd.xlane.f32.xlu0 %v1415
      %v1417 = vpop.xlane.xlu0 %1416
      %v1418 = vsel %vm821, %v1185, 0.0
      %v1419 = vadd.f32 %v1184, %v1418
      %1420 = vadd.xlane.f32.xlu0 %v1419
      %v1421 = vpop.xlane.xlu0 %1420
      %v1422 = vsel %vm821, %v1187, 0.0
      %v1423 = vadd.f32 %v1186, %v1422
      %1424 = vadd.xlane.f32.xlu0 %v1423
      %v1425 = vpop.xlane.xlu0 %1424
      %v1426 = vsel %vm821, %v1189, 0.0
      %v1427 = vadd.f32 %v1188, %v1426
      %1428 = vadd.xlane.f32.xlu0 %v1427
      %v1429 = vpop.xlane.xlu0 %1428
      %v1430 = vsel %vm821, %v1191, 0.0
      %v1431 = vadd.f32 %v1190, %v1430
      %1432 = vadd.xlane.f32.xlu0 %v1431
      %v1433 = vpop.xlane.xlu0 %1432
      %v1434 = vsel %vm821, %v1193, 0.0
      %v1435 = vadd.f32 %v1192, %v1434
      %1436 = vadd.xlane.f32.xlu0 %v1435
      %v1437 = vpop.xlane.xlu0 %1436
      %v1438 = vsel %vm821, %v1195, 0.0
      %v1439 = vadd.f32 %v1194, %v1438
      %1440 = vadd.xlane.f32.xlu0 %v1439
      %v1441 = vpop.xlane.xlu0 %1440
      %v1442 = vsel %vm821, %v1197, 0.0
      %v1443 = vadd.f32 %v1196, %v1442
      %1444 = vadd.xlane.f32.xlu0 %v1443
      %v1445 = vpop.xlane.xlu0 %1444
      %v1446 = vsel %vm821, %v1199, 0.0
      %v1447 = vadd.f32 %v1198, %v1446
      %1448 = vadd.xlane.f32.xlu0 %v1447
      %v1449 = vpop.xlane.xlu0 %1448
      %v1450 = vsel %vm821, %v1201, 0.0
      %v1451 = vadd.f32 %v1200, %v1450
      %1452 = vadd.xlane.f32.xlu0 %v1451
      %v1453 = vpop.xlane.xlu0 %1452
      %v1454 = vsel %vm821, %v1203, 0.0
      %v1455 = vadd.f32 %v1202, %v1454
      %1456 = vadd.xlane.f32.xlu0 %v1455
      %v1457 = vpop.xlane.xlu0 %1456
      %v1458 = vsel %vm821, %v1205, 0.0
      %v1459 = vadd.f32 %v1204, %v1458
      %1460 = vadd.xlane.f32.xlu0 %v1459
      %v1461 = vpop.xlane.xlu0 %1460
      %vm1462 = vcmask 7168
      %1463 = vst.msk [vmem:[%s291] sm:$0xff] %vm1462, %v825
      %1464 = vst.msk [vmem:[%s291 + $0x8] sm:$0xff] %vm1462, %v829
      %1465 = vst.msk [vmem:[%s291 + $0x10] sm:$0xff] %vm1462, %v833
      %1466 = vst.msk [vmem:[%s291 + $0x18] sm:$0xff] %vm1462, %v837
      %1467 = vst.msk [vmem:[%s291 + $0x20] sm:$0xff] %vm1462, %v841
      %1468 = vst.msk [vmem:[%s291 + $0x28] sm:$0xff] %vm1462, %v845
      %1469 = vst.msk [vmem:[%s291 + $0x30] sm:$0xff] %vm1462, %v849
      %1470 = vst.msk [vmem:[%s291 + $0x38] sm:$0xff] %vm1462, %v853
      %1471 = vst.msk [vmem:[%s291 + $0x40] sm:$0xff] %vm1462, %v857
      %1472 = vst.msk [vmem:[%s291 + $0x48] sm:$0xff] %vm1462, %v861
      %1473 = vst.msk [vmem:[%s291 + $0x50] sm:$0xff] %vm1462, %v865
      %1474 = vst.msk [vmem:[%s291 + $0x58] sm:$0xff] %vm1462, %v869
      %1475 = vst.msk [vmem:[%s291 + $0x60] sm:$0xff] %vm1462, %v873
      %1476 = vst.msk [vmem:[%s291 + $0x68] sm:$0xff] %vm1462, %v877
      %1477 = vst.msk [vmem:[%s291 + $0x70] sm:$0xff] %vm1462, %v881
      %1478 = vst.msk [vmem:[%s291 + $0x78] sm:$0xff] %vm1462, %v885
      %1479 = vst.msk [vmem:[%s291 + $0x80] sm:$0xff] %vm1462, %v889
      %1480 = vst.msk [vmem:[%s291 + $0x88] sm:$0xff] %vm1462, %v893
      %1481 = vst.msk [vmem:[%s291 + $0x90] sm:$0xff] %vm1462, %v897
      %1482 = vst.msk [vmem:[%s291 + $0x98] sm:$0xff] %vm1462, %v901
      %1483 = vst.msk [vmem:[%s291 + $0xa0] sm:$0xff] %vm1462, %v905
      %1484 = vst.msk [vmem:[%s291 + $0xa8] sm:$0xff] %vm1462, %v909
      %1485 = vst.msk [vmem:[%s291 + $0xb0] sm:$0xff] %vm1462, %v913
      %1486 = vst.msk [vmem:[%s291 + $0xb8] sm:$0xff] %vm1462, %v917
      %1487 = vst.msk [vmem:[%s291 + $0xc0] sm:$0xff] %vm1462, %v921
      %1488 = vst.msk [vmem:[%s291 + $0xc8] sm:$0xff] %vm1462, %v925
      %1489 = vst.msk [vmem:[%s291 + $0xd0] sm:$0xff] %vm1462, %v929
      %1490 = vst.msk [vmem:[%s291 + $0xd8] sm:$0xff] %vm1462, %v933
      %1491 = vst.msk [vmem:[%s291 + $0xe0] sm:$0xff] %vm1462, %v937
      %1492 = vst.msk [vmem:[%s291 + $0xe8] sm:$0xff] %vm1462, %v941
      %1493 = vst.msk [vmem:[%s291 + $0xf0] sm:$0xff] %vm1462, %v945
      %1494 = vst.msk [vmem:[%s291 + $0xf8] sm:$0xff] %vm1462, %v949
      %1495 = vst.msk [vmem:[%s291 + $0x100] sm:$0xff] %vm1462, %v953
      %1496 = vst.msk [vmem:[%s291 + $0x108] sm:$0xff] %vm1462, %v957
      %1497 = vst.msk [vmem:[%s291 + $0x110] sm:$0xff] %vm1462, %v961
      %1498 = vst.msk [vmem:[%s291 + $0x118] sm:$0xff] %vm1462, %v965
      %1499 = vst.msk [vmem:[%s291 + $0x120] sm:$0xff] %vm1462, %v969
      %1500 = vst.msk [vmem:[%s291 + $0x128] sm:$0xff] %vm1462, %v973
      %1501 = vst.msk [vmem:[%s291 + $0x130] sm:$0xff] %vm1462, %v977
      %1502 = vst.msk [vmem:[%s291 + $0x138] sm:$0xff] %vm1462, %v981
      %1503 = vst.msk [vmem:[%s291 + $0x140] sm:$0xff] %vm1462, %v985
      %1504 = vst.msk [vmem:[%s291 + $0x148] sm:$0xff] %vm1462, %v989
      %1505 = vst.msk [vmem:[%s291 + $0x150] sm:$0xff] %vm1462, %v993
      %1506 = vst.msk [vmem:[%s291 + $0x158] sm:$0xff] %vm1462, %v997
      %1507 = vst.msk [vmem:[%s291 + $0x160] sm:$0xff] %vm1462, %v1001
      %1508 = vst.msk [vmem:[%s291 + $0x168] sm:$0xff] %vm1462, %v1005
      %1509 = vst.msk [vmem:[%s291 + $0x170] sm:$0xff] %vm1462, %v1009
      %1510 = vst.msk [vmem:[%s291 + $0x178] sm:$0xff] %vm1462, %v1013
      %1511 = vst.msk [vmem:[%s291 + $0x180] sm:$0xff] %vm1462, %v1017
      %1512 = vst.msk [vmem:[%s291 + $0x188] sm:$0xff] %vm1462, %v1021
      %1513 = vst.msk [vmem:[%s291 + $0x190] sm:$0xff] %vm1462, %v1025
      %1514 = vst.msk [vmem:[%s291 + $0x198] sm:$0xff] %vm1462, %v1029
      %1515 = vst.msk [vmem:[%s291 + $0x1a0] sm:$0xff] %vm1462, %v1033
      %1516 = vst.msk [vmem:[%s291 + $0x1a8] sm:$0xff] %vm1462, %v1037
      %1517 = vst.msk [vmem:[%s291 + $0x1b0] sm:$0xff] %vm1462, %v1041
      %1518 = vst.msk [vmem:[%s291 + $0x1b8] sm:$0xff] %vm1462, %v1045
      %1519 = vst.msk [vmem:[%s291 + $0x1c0] sm:$0xff] %vm1462, %v1049
      %1520 = vst.msk [vmem:[%s291 + $0x1c8] sm:$0xff] %vm1462, %v1053
      %1521 = vst.msk [vmem:[%s291 + $0x1d0] sm:$0xff] %vm1462, %v1057
      %1522 = vst.msk [vmem:[%s291 + $0x1d8] sm:$0xff] %vm1462, %v1061
      %1523 = vst.msk [vmem:[%s291 + $0x1e0] sm:$0xff] %vm1462, %v1065
      %1524 = vst.msk [vmem:[%s291 + $0x1e8] sm:$0xff] %vm1462, %v1069
      %1525 = vst.msk [vmem:[%s291 + $0x1f0] sm:$0xff] %vm1462, %v1073
      %1526 = vst.msk [vmem:[%s291 + $0x1f8] sm:$0xff] %vm1462, %v1077
      %1527 = vst.msk [vmem:[%s301] sm:$0xff] %vm1462, %v1209
      %1528 = vst.msk [vmem:[%s301 + $0x8] sm:$0xff] %vm1462, %v1213
      %1529 = vst.msk [vmem:[%s301 + $0x10] sm:$0xff] %vm1462, %v1217
      %1530 = vst.msk [vmem:[%s301 + $0x18] sm:$0xff] %vm1462, %v1221
      %1531 = vst.msk [vmem:[%s301 + $0x20] sm:$0xff] %vm1462, %v1225
      %1532 = vst.msk [vmem:[%s301 + $0x28] sm:$0xff] %vm1462, %v1229
      %1533 = vst.msk [vmem:[%s301 + $0x30] sm:$0xff] %vm1462, %v1233
      %1534 = vst.msk [vmem:[%s301 + $0x38] sm:$0xff] %vm1462, %v1237
      %1535 = vst.msk [vmem:[%s301 + $0x40] sm:$0xff] %vm1462, %v1241
      %1536 = vst.msk [vmem:[%s301 + $0x48] sm:$0xff] %vm1462, %v1245
      %1537 = vst.msk [vmem:[%s301 + $0x50] sm:$0xff] %vm1462, %v1249
      %1538 = vst.msk [vmem:[%s301 + $0x58] sm:$0xff] %vm1462, %v1253
      %1539 = vst.msk [vmem:[%s301 + $0x60] sm:$0xff] %vm1462, %v1257
      %1540 = vst.msk [vmem:[%s301 + $0x68] sm:$0xff] %vm1462, %v1261
      %1541 = vst.msk [vmem:[%s301 + $0x70] sm:$0xff] %vm1462, %v1265
      %1542 = vst.msk [vmem:[%s301 + $0x78] sm:$0xff] %vm1462, %v1269
      %1543 = vst.msk [vmem:[%s301 + $0x80] sm:$0xff] %vm1462, %v1273
      %1544 = vst.msk [vmem:[%s301 + $0x88] sm:$0xff] %vm1462, %v1277
      %1545 = vst.msk [vmem:[%s301 + $0x90] sm:$0xff] %vm1462, %v1281
      %1546 = vst.msk [vmem:[%s301 + $0x98] sm:$0xff] %vm1462, %v1285
      %1547 = vst.msk [vmem:[%s301 + $0xa0] sm:$0xff] %vm1462, %v1289
      %1548 = vst.msk [vmem:[%s301 + $0xa8] sm:$0xff] %vm1462, %v1293
      %1549 = vst.msk [vmem:[%s301 + $0xb0] sm:$0xff] %vm1462, %v1297
      %1550 = vst.msk [vmem:[%s301 + $0xb8] sm:$0xff] %vm1462, %v1301
      %1551 = vst.msk [vmem:[%s301 + $0xc0] sm:$0xff] %vm1462, %v1305
      %1552 = vst.msk [vmem:[%s301 + $0xc8] sm:$0xff] %vm1462, %v1309
      %1553 = vst.msk [vmem:[%s301 + $0xd0] sm:$0xff] %vm1462, %v1313
      %1554 = vst.msk [vmem:[%s301 + $0xd8] sm:$0xff] %vm1462, %v1317
      %1555 = vst.msk [vmem:[%s301 + $0xe0] sm:$0xff] %vm1462, %v1321
      %1556 = vst.msk [vmem:[%s301 + $0xe8] sm:$0xff] %vm1462, %v1325
      %1557 = vst.msk [vmem:[%s301 + $0xf0] sm:$0xff] %vm1462, %v1329
      %1558 = vst.msk [vmem:[%s301 + $0xf8] sm:$0xff] %vm1462, %v1333
      %1559 = vst.msk [vmem:[%s301 + $0x100] sm:$0xff] %vm1462, %v1337
      %1560 = vst.msk [vmem:[%s301 + $0x108] sm:$0xff] %vm1462, %v1341
      %1561 = vst.msk [vmem:[%s301 + $0x110] sm:$0xff] %vm1462, %v1345
      %1562 = vst.msk [vmem:[%s301 + $0x118] sm:$0xff] %vm1462, %v1349
      %1563 = vst.msk [vmem:[%s301 + $0x120] sm:$0xff] %vm1462, %v1353
      %1564 = vst.msk [vmem:[%s301 + $0x128] sm:$0xff] %vm1462, %v1357
      %1565 = vst.msk [vmem:[%s301 + $0x130] sm:$0xff] %vm1462, %v1361
      %1566 = vst.msk [vmem:[%s301 + $0x138] sm:$0xff] %vm1462, %v1365
      %1567 = vst.msk [vmem:[%s301 + $0x140] sm:$0xff] %vm1462, %v1369
      %1568 = vst.msk [vmem:[%s301 + $0x148] sm:$0xff] %vm1462, %v1373
      %1569 = vst.msk [vmem:[%s301 + $0x150] sm:$0xff] %vm1462, %v1377
      %1570 = vst.msk [vmem:[%s301 + $0x158] sm:$0xff] %vm1462, %v1381
      %1571 = vst.msk [vmem:[%s301 + $0x160] sm:$0xff] %vm1462, %v1385
      %1572 = vst.msk [vmem:[%s301 + $0x168] sm:$0xff] %vm1462, %v1389
      %1573 = vst.msk [vmem:[%s301 + $0x170] sm:$0xff] %vm1462, %v1393
      %1574 = vst.msk [vmem:[%s301 + $0x178] sm:$0xff] %vm1462, %v1397
      %1575 = vst.msk [vmem:[%s301 + $0x180] sm:$0xff] %vm1462, %v1401
      %1576 = vst.msk [vmem:[%s301 + $0x188] sm:$0xff] %vm1462, %v1405
      %1577 = vst.msk [vmem:[%s301 + $0x190] sm:$0xff] %vm1462, %v1409
      %1578 = vst.msk [vmem:[%s301 + $0x198] sm:$0xff] %vm1462, %v1413
      %1579 = vst.msk [vmem:[%s301 + $0x1a0] sm:$0xff] %vm1462, %v1417
      %1580 = vst.msk [vmem:[%s301 + $0x1a8] sm:$0xff] %vm1462, %v1421
      %1581 = vst.msk [vmem:[%s301 + $0x1b0] sm:$0xff] %vm1462, %v1425
      %1582 = vst.msk [vmem:[%s301 + $0x1b8] sm:$0xff] %vm1462, %v1429
      %1583 = vst.msk [vmem:[%s301 + $0x1c0] sm:$0xff] %vm1462, %v1433
      %1584 = vst.msk [vmem:[%s301 + $0x1c8] sm:$0xff] %vm1462, %v1437
      %1585 = vst.msk [vmem:[%s301 + $0x1d0] sm:$0xff] %vm1462, %v1441
      %1586 = vst.msk [vmem:[%s301 + $0x1d8] sm:$0xff] %vm1462, %v1445
      %1587 = vst.msk [vmem:[%s301 + $0x1e0] sm:$0xff] %vm1462, %v1449
      %1588 = vst.msk [vmem:[%s301 + $0x1e8] sm:$0xff] %vm1462, %v1453
      %1589 = vst.msk [vmem:[%s301 + $0x1f0] sm:$0xff] %vm1462, %v1457
      %1590 = vst.msk [vmem:[%s301 + $0x1f8] sm:$0xff] %vm1462, %v1461
      %s1591 = smul.u32 64, %s21
      %p1592 = scmp.lt.s32.totalorder %s20, 1
      %s1593 = scalar_select %p1592, %s20, 1
      %p1594 = scmp.lt.s32.totalorder %s1591, 127
      %s1595 = scalar_select %p1594, %s1591, 127
      %s1596 = smul.addr %s1593, 128
      %s1597 = sadd.s32 %s1595, %s1596
      %s1598 = smul.addr %s1597, 8
      %s1599 = scalar_lea.vmem %s3, %s1598
      %s1600 = smul.u32 64, %s21
      %p1601 = scmp.lt.s32.totalorder %s20, 1
      %s1602 = scalar_select %p1601, %s20, 1
      %p1603 = scmp.lt.s32.totalorder %s1600, 127
      %s1604 = scalar_select %p1603, %s1600, 127
      %s1605 = smul.addr %s1602, 128
      %s1606 = sadd.s32 %s1604, %s1605
      %s1607 = smul.addr %s1606, 8
      %s1608 = scalar_lea.vmem %s4, %s1607
      // Predicated region
      $region33: #{tpu_custom_call.1} parent=31 // pred_check
        %p1609 = pneg %p125
      $region34: #{tpu_custom_call.1} parent=31 // pred_check_branch
        %1611 = sbr.rel (%p1609) target = $region36
      $region35: #{tpu_custom_call.1} parent=31 // pred_region
        %s1612 = smul.u32 64, %s21
      $region36: #{tpu_custom_call.1} parent=31 // pred_fallthru
        _
      // Predicated region
      $region37: #{tpu_custom_call.1} parent=31 // pred_check
        %p1613 = pneg %p153
      $region38: #{tpu_custom_call.1} parent=31 // pred_check_branch
        %1615 = sbr.rel (%p1613) target = $region40
      $region39: #{tpu_custom_call.1} parent=31 // pred_region
        %s1616 = smul.u32 64, %s21
      $region40: #{tpu_custom_call.1} parent=31 // pred_fallthru
        _
    $region32: #{tpu_custom_call.1} parent=5 // pred_fallthru
      _
    %p1617 = scmp.le.s32.totalorder 2, %s11
    // Predicated region
    $region41: #{tpu_custom_call.1} parent=5 // pred_check
      %p1618 = pneg %p1617
    $region42: #{tpu_custom_call.1} parent=5 // pred_check_branch
      %1620 = sbr.rel (%p1618) target = $region44
    $region43: #{tpu_custom_call.1} parent=5 // pred_region
      %s1621 = ssub.s32 %s11, 2
      // Predicated region
      $region45: #{tpu_custom_call.1} parent=43 // pred_check
        %p1622 = pneg %p131
      $region46: #{tpu_custom_call.1} parent=43 // pred_check_branch
        %1624 = sbr.rel (%p1622) target = $region48
      $region47: #{tpu_custom_call.1} parent=43 // pred_region
        %s1625 = smul.u32 64, %s23
        %p1626 = scmp.lt.s32.totalorder %s22, 1
        %s1627 = scalar_select %p1626, %s22, 1
        %p1628 = scmp.lt.s32.totalorder %s1625, 127
        %s1629 = scalar_select %p1628, %s1625, 127
        %s1630 = smul.addr %s1627, 128
        %s1631 = sadd.s32 %s1629, %s1630
        %s1632 = smul.addr %s1631, 8
        %s1633 = scalar_lea.vmem %s3, %s1632
      $region48: #{tpu_custom_call.1} parent=43 // pred_fallthru
        _
      // Predicated region
      $region49: #{tpu_custom_call.1} parent=43 // pred_check
        %p1634 = pneg %p159
      $region50: #{tpu_custom_call.1} parent=43 // pred_check_branch
        %1636 = sbr.rel (%p1634) target = $region52
      $region51: #{tpu_custom_call.1} parent=43 // pred_region
        %s1637 = smul.u32 64, %s23
        %p1638 = scmp.lt.s32.totalorder %s22, 1
        %s1639 = scalar_select %p1638, %s22, 1
        %p1640 = scmp.lt.s32.totalorder %s1637, 127
        %s1641 = scalar_select %p1640, %s1637, 127
        %s1642 = smul.addr %s1639, 128
        %s1643 = sadd.s32 %s1641, %s1642
        %s1644 = smul.addr %s1643, 8
        %s1645 = scalar_lea.vmem %s4, %s1644
      $region52: #{tpu_custom_call.1} parent=43 // pred_fallthru
        _
    $region44: #{tpu_custom_call.1} parent=5 // pred_fallthru
      _
  $region6: #{tpu_custom_call.1} parent=0 // loop_footer
    %s15 = sadd.s32 1, %s11
  $region7: #{tpu_custom_call.1} parent=0 // loop_footer_branch
    %10 = sbr.rel target = $region3
  $region8: #{tpu_custom_call.1} parent=0 // loop_exit
    _

</llo_original>
